<compile_context>
chip_gen: v7x
topology: tpu7x:2x2x1
jax: 0.10.0
libtpu: 0.0.40
codegen_flags: <defaults>
</compile_context>

<pallas_src>
import functools

import numpy as np
import jax
import jax.numpy as jnp
from jax import lax
from jax.experimental import pallas as pl
from jax.experimental.pallas import tpu as pltpu


_W_DTYPE = jnp.bfloat16   # MXU operand dtype (accumulation stays f32 in the dot)


def _round_up(a, b):
    return (a + b - 1) // b * b


def _tensorf_cp_kernel(pts_ref, tbig_ref, rowpos_ref, reducer_ref, out_ref,
                       w_ref, *, F, R, Nc, Nct, NcA, Kp, crop_r, crop_y):
    # Points arrive transposed: (4, TM), so every per-point scalar below is a
    # (1, TM) lane-dense vector instead of a (TM, 1) lane-sparse one.
    x = pts_ref[0:1, :]
    y = pts_ref[1:2, :]
    z = pts_ref[2:3, :]
    t = pts_ref[3:4, :]
    cy0, cy1 = crop_y

    mask = (x * x + z * z <= crop_r * crop_r) & (y >= cy0) & (y <= cy1)

    # Coordinate normalization (matches the PyTorch forward).
    xn = x / crop_r
    zn = z / crop_r
    yn = (y - cy0) / (cy1 - cy0) * 2.0 - 1.0
    tn = t * 2.0 - 1.0

    # Un-normalized grid_sample coordinate (align_corners=False).
    def iy(c, n):
        return ((c + 1.0) * n - 1.0) * 0.5

    sx = iy(xn, Nc)
    sy = iy(yn, Nc)
    sz = iy(zn, Nc)
    st = iy(tn, Nct)

    # Hat-weight matrix W (Kp, TM), filled per coordinate block into a bf16
    # VMEM scratch: sub / abs / 1- / max / cast only (~4 VPU ops per element),
    # no row-range compares.  max(0, 1 - |iy - col|) == the bilinear weights
    # with 'zeros' padding.  rowpos holds the in-block column index (f32,
    # resident); padded rows hold -1e6 so their weight is exactly 0, and the
    # matching T_big columns are exactly zero.
    def fill(lo, hi, s):
        rp = rowpos_ref[lo:hi, :]                                # (n, 1) f32
        w_ref[lo:hi, :] = jnp.maximum(
            0.0, 1.0 - jnp.abs(s - rp)).astype(_W_DTYPE)

    fill(0 * NcA, 1 * NcA, sx)
    fill(1 * NcA, 2 * NcA, sy)
    fill(2 * NcA, 3 * NcA, sz)
    fill(3 * NcA, Kp, st)

    # Single block-diagonal MXU pass: (4FR, Kp) @ (Kp, TM) -> (4FR, TM),
    # bf16 operands, f32 accumulation.
    acc = jnp.dot(tbig_ref[...], w_ref[...],
                  preferred_element_type=jnp.float32)

    FR = F * R
    # CP product: element-wise product of the four coordinate factor blocks
    # (sublane slices of the fused matmul result).
    prod = (acc[0:FR, :] * acc[FR:2 * FR, :]
            * acc[2 * FR:3 * FR, :] * acc[3 * FR:4 * FR, :])     # (FR, TM)

    # Rank reduction .view(M, F, R).sum(-1) as one tiny MXU matmul against a
    # resident block-ones reducer -> one lane-dense (F, TM) block.
    res = jnp.dot(reducer_ref[...], prod,
                  preferred_element_type=jnp.float32)            # (F, TM)

    # Row 0: sigma = trunc_exp forward == exp, crop mask applied *inside* the
    # select so out-of-crop points never produce inf * 0 = NaN.
    # Rows 1..F-1: sigmoid.  One full-block lane-dense store.
    is_sigma = lax.broadcasted_iota(jnp.int32, res.shape, 0) == 0
    e = jnp.exp(jnp.where(is_sigma, res, -res))
    out_ref[...] = jnp.where(is_sigma,
                             jnp.where(mask, e, 0.0),
                             1.0 / (1.0 + e))


def _build_level_tables(xv, yv, zv, tv, F, R):
    """Build the resident kernel-side tables for one hierarchy level.

    xv/yv/zv/tv: (F*R, Nc_i) float32 factor tables.
    Returns (tbig[bf16], rowpos[f32], reducer[f32], Nc, Nct, NcA, Kp).
    """
    FR = F * R
    Nc = int(xv.shape[1])
    Nct = int(tv.shape[1])
    # Per-coordinate row blocks padded to a multiple of 16 (bf16 sublane
    # packing); total contraction dim padded to a multiple of 128 lanes.
    NcA = _round_up(Nc, 16)
    Kp = _round_up(3 * NcA + _round_up(Nct, 16), 128)

    # Block-diagonal fused factor table.
    # NOTE: all off-diagonal / padded entries MUST remain exactly zero -- they
    # implement grid_sample's 'zeros' padding for out-of-range taps.
    tbig = jnp.zeros((4 * FR, Kp), jnp.float32)
    tbig = tbig.at[0 * FR:1 * FR, 0 * NcA:0 * NcA + Nc].set(xv)
    tbig = tbig.at[1 * FR:2 * FR, 1 * NcA:1 * NcA + Nc].set(yv)
    tbig = tbig.at[2 * FR:3 * FR, 2 * NcA:2 * NcA + Nc].set(zv)
    tbig = tbig.at[3 * FR:4 * FR, 3 * NcA:3 * NcA + Nct].set(tv)
    tbig = tbig.astype(_W_DTYPE)

    # Resident row-position vector: row index within its coordinate block;
    # padded rows get -1e6 so their hat weight is exactly 0.
    rowpos = np.full((Kp, 1), -1.0e6, np.float32)
    rowpos[0 * NcA:0 * NcA + Nc, 0] = np.arange(Nc, dtype=np.float32)
    rowpos[1 * NcA:1 * NcA + Nc, 0] = np.arange(Nc, dtype=np.float32)
    rowpos[2 * NcA:2 * NcA + Nc, 0] = np.arange(Nc, dtype=np.float32)
    rowpos[3 * NcA:3 * NcA + Nct, 0] = np.arange(Nct, dtype=np.float32)

    # Block-ones rank reducer: res[f] = sum_r prod[f*R + r].
    reducer = np.zeros((F, FR), np.float32)
    for f in range(F):
        reducer[f, f * R:(f + 1) * R] = 1.0

    return (tbig, jnp.asarray(rowpos), jnp.asarray(reducer),
            Nc, Nct, NcA, Kp)


_LEVEL_CACHE = {}


def _get_level_tables(xvec, yvec, zvec, tvec, F, R):
    # Level tables only change when the parameter arrays change (every
    # Hiters/Hsteps iterations), so cache them keyed on parameter identity to
    # keep the scatter/pad build graph off the per-forward hot path.
    key = (id(xvec), id(yvec), id(zvec), id(tvec), int(F), int(R))
    hit = _LEVEL_CACHE.get(key)
    if hit is None:
        hit = _build_level_tables(
            xvec[0, :, :, 0].astype(jnp.float32),
            yvec[0, :, :, 0].astype(jnp.float32),
            zvec[0, :, :, 0].astype(jnp.float32),
            tvec[0, :, :, 0].astype(jnp.float32), F, R)
        _LEVEL_CACHE[key] = hit
    return hit


def tensorf_cp_forward(pts, viewdirs, iteration,
                       xvec_hh, yvec_hh, zvec_hh, tvec_hh,
                       *, F=4, R=8, Hsteps=4, Hiters=2000,
                       crop_y=(-1.0, 1.0), crop_r=1.0, tile_m=4096):
    """JAX/Pallas equivalent of TensoRFCPNet.forward.

    viewdirs is accepted for signature parity but (as in the reference module
    with use_viewdirs=False) is unused.  tile_m = points per grid step;
    4096-8192 amortizes per-step pipeline overhead, and the tile is capped so
    the grid keeps >= 4 steps (dual-TensorCore chips such as v7x can then
    shard the "parallel" axis across both cores).
    """
    del viewdirs
    batch_shape = pts.shape[:-1]
    pts2 = pts.reshape(-1, pts.shape[-1]).astype(jnp.float32)
    M = pts2.shape[0]

    supposed_idx = min(Hsteps - 1, iteration * Hsteps // Hiters)
    # TODO(synk): rescale_grid / resize_vec (stateful in-place parameter
    # resizing across Hsteps) is a training-time side effect and is not
    # reproduced; we simply index the active grid level.
    tbig, rowpos, reducer, Nc, Nct, NcA, Kp = _get_level_tables(
        xvec_hh[supposed_idx], yvec_hh[supposed_idx],
        zvec_hh[supposed_idx], tvec_hh[supposed_idx], F, R)
    FR = F * R

    # Tile size: as large as possible while keeping >= min_grid grid steps.
    min_grid = 4
    tile = _round_up(max(128, min(tile_m, -(-M // min_grid))), 128)
    Mp = _round_up(M, tile)

    # Lane-dense transposed points (4, M), padded to a tile multiple.
    pts_t = jnp.transpose(pts2)
    if Mp != M:
        pts_t = jnp.pad(pts_t, ((0, 0), (0, Mp - M)))

    kernel = functools.partial(
        _tensorf_cp_kernel, F=F, R=R, Nc=Nc, Nct=Nct, NcA=NcA, Kp=Kp,
        crop_r=float(crop_r), crop_y=(float(crop_y[0]), float(crop_y[1])))

    out = pl.pallas_call(
        kernel,
        out_shape=jax.ShapeDtypeStruct((F, Mp), jnp.float32),
        grid_spec=pltpu.PrefetchScalarGridSpec(
            num_scalar_prefetch=0,
            grid=(Mp // tile,),
            in_specs=[
                pl.BlockSpec((4, tile), lambda i: (0, i)),        # points
                pl.BlockSpec((4 * FR, Kp), lambda i: (0, 0)),     # factor table
                pl.BlockSpec((Kp, 1), lambda i: (0, 0)),          # row positions
                pl.BlockSpec((F, FR), lambda i: (0, 0)),          # rank reducer
            ],
            out_specs=pl.BlockSpec((F, tile), lambda i: (0, i)),  # lane-dense out
            scratch_shapes=[pltpu.VMEM((Kp, tile), _W_DTYPE)],    # hat weights
        ),
        compiler_params=pltpu.CompilerParams(
            dimension_semantics=("parallel",)),
    )(pts_t, tbig, rowpos, reducer)

    out = out[:, :M]
    sigma = out[0].reshape(batch_shape)
    rgb = jnp.transpose(out[1:4]).reshape(batch_shape + (3,))
    return {"rgb": rgb, "sigma": sigma}


# ----------------------------- pure-JAX reference ---------------------------
def _ref_sample(table, c):
    n = table.shape[0]
    iy = ((c + 1.0) * n - 1.0) * 0.5
    y0 = jnp.floor(iy)
    w1 = iy - y0
    w0 = 1.0 - w1
    y0i = y0.astype(jnp.int32)
    y1i = y0i + 1
    in0 = ((y0i >= 0) & (y0i < n)).astype(jnp.float32)[:, None]
    in1 = ((y1i >= 0) & (y1i < n)).astype(jnp.float32)[:, None]
    v0 = in0 * table[jnp.clip(y0i, 0, n - 1)]
    v1 = in1 * table[jnp.clip(y1i, 0, n - 1)]
    return w0[:, None] * v0 + w1[:, None] * v1


def _ref_forward(pts, xtab, ytab, ztab, ttab, *, F, R, crop_y, crop_r):
    batch_shape = pts.shape[:-1]
    p = pts.reshape(-1, pts.shape[-1]).astype(jnp.float32)
    x, y, z, t = p[:, 0], p[:, 1], p[:, 2], p[:, 3]
    cy0, cy1 = crop_y
    mask = (x * x + z * z <= crop_r ** 2) & (y >= cy0) & (y <= cy1)
    xn = x / crop_r
    zn = z / crop_r
    yn = (y - cy0) / (cy1 - cy0) * 2.0 - 1.0
    tn = t * 2.0 - 1.0
    prod = (_ref_sample(xtab, xn) * _ref_sample(ytab, yn)
            * _ref_sample(ztab, zn) * _ref_sample(ttab, tn))
    res = prod.reshape(-1, F, R).sum(-1)
    sigma = jnp.exp(res[:, 0]) * mask.astype(jnp.float32)
    rgb = jax.nn.sigmoid(res[:, 1:])
    return {"rgb": rgb.reshape(batch_shape + (3,)),
            "sigma": sigma.reshape(batch_shape)}


if __name__ == "__main__":
    # Small, deterministic configuration (module defaults scaled down).
    N, Ntime = 32, 16
    F, R = 4, 8                     # F = 1 + 3, rank R
    Hsteps, Hmin, Hmin_time, Hiters = 4, 8, 8, 2000
    init_gain = 1.0
    crop_y, crop_r = (-1.0, 1.0), 1.0

    key = jax.random.PRNGKey(0)
    keys = jax.random.split(key, 4 * Hsteps + 2)

    xvec_hh, yvec_hh, zvec_hh, tvec_hh = [], [], [], []
    kidx = 0
    for Nc in np.geomspace(Hmin, N, num=Hsteps):
        Nc = int(Nc)
        for lst in (xvec_hh, yvec_hh, zvec_hh):
            lst.append(jax.random.normal(keys[kidx], (1, F * R, Nc, 1),
                                         jnp.float32) / R * init_gain)
            kidx += 1
    for Nc in np.geomspace(Hmin_time, Ntime, num=Hsteps):
        Nc = int(Nc)
        tvec_hh.append(jax.random.normal(keys[kidx], (1, F * R, Nc, 1),
                                         jnp.float32) / R * init_gain)
        kidx += 1

    batch_shape = (4, 1024)          # -> M = 4096 points -> 4 grid steps @ 1024
    xyz = jax.random.uniform(keys[kidx], batch_shape + (3,),
                             minval=-1.2, maxval=1.2, dtype=jnp.float32)
    tc = jax.random.uniform(keys[kidx + 1], batch_shape + (1,),
                            minval=0.0, maxval=1.0, dtype=jnp.float32)
    pts = jnp.concatenate([xyz, tc], axis=-1)             # (..., 4) = (x,y,z,t)
    viewdirs = jnp.zeros(batch_shape + (3,), jnp.float32)  # unused

    iteration = 1500                 # -> active idx = min(3, 1500*4//2000) = 3

    out = tensorf_cp_forward(pts, viewdirs, iteration,
                             xvec_hh, yvec_hh, zvec_hh, tvec_hh,
                             F=F, R=R, Hsteps=Hsteps, Hiters=Hiters,
                             crop_y=crop_y, crop_r=crop_r, tile_m=4096)
    jax.block_until_ready(out)

    # Correctness check against a pure-JAX f32 reference of the PyTorch
    # semantics.  Tolerances are relaxed vs f32-only because the kernel's MXU
    # operands (factor table + hat weights) are bf16 (f32 accumulation).
    idx = min(Hsteps - 1, iteration * Hsteps // Hiters)
    tab = lambda v: jnp.transpose(v[0, :, :, 0])
    ref = _ref_forward(pts, tab(xvec_hh[idx]), tab(yvec_hh[idx]),
                       tab(zvec_hh[idx]), tab(tvec_hh[idx]),
                       F=F, R=R, crop_y=crop_y, crop_r=crop_r)
    np.testing.assert_allclose(np.asarray(out["sigma"]), np.asarray(ref["sigma"]),
                               rtol=1e-2, atol=1e-3)
    np.testing.assert_allclose(np.asarray(out["rgb"]), np.asarray(ref["rgb"]),
                               rtol=1e-2, atol=1e-3)
    print("KERNEL_OK")
</pallas_src>

<mosaic_0001>
module attributes {stable_mosaic.version = 11 : i64} {
  func.func @_tensorf_cp_kernel(%arg0: i32, %arg1: memref<4x1024xf32, #tpu.memory_space<vmem>>, %arg2: memref<128x128xbf16, #tpu.memory_space<vmem>>, %arg3: memref<128x1xf32, #tpu.memory_space<vmem>>, %arg4: memref<4x32xf32, #tpu.memory_space<vmem>>, %arg5: memref<4x1024xf32, #tpu.memory_space<vmem>>, %arg6: memref<128x1024xbf16, #tpu.memory_space<vmem>>) attributes {dimension_semantics = [#tpu.dimension_semantics<parallel>], iteration_bounds = array<i64: 4>, scalar_prefetch = 0 : i64, scratch_operands = 1 : i64, tpu.core_type = #tpu.core_type<tc>, window_params = [{transform_indices = @transform_0, window_bounds = array<i64: 4, 1024>}, {pipeline_mode = #tpu.pipeline_mode<synchronous>, transform_indices = @transform_1, window_bounds = array<i64: 128, 128>}, {pipeline_mode = #tpu.pipeline_mode<synchronous>, transform_indices = @transform_2, window_bounds = array<i64: 128, 1>}, {pipeline_mode = #tpu.pipeline_mode<synchronous>, transform_indices = @transform_3, window_bounds = array<i64: 4, 32>}, {transform_indices = @transform_4, window_bounds = array<i64: 4, 1024>}]} {
    %c0 = arith.constant 0 : index
    %c0_0 = arith.constant 0 : index
    %0 = vector.load %arg1[%c0, %c0_0] : memref<4x1024xf32, #tpu.memory_space<vmem>>, vector<1x1024xf32>
    %c1 = arith.constant 1 : index
    %c0_1 = arith.constant 0 : index
    %1 = vector.load %arg1[%c1, %c0_1] : memref<4x1024xf32, #tpu.memory_space<vmem>>, vector<1x1024xf32>
    %c2 = arith.constant 2 : index
    %c0_2 = arith.constant 0 : index
    %2 = vector.load %arg1[%c2, %c0_2] : memref<4x1024xf32, #tpu.memory_space<vmem>>, vector<1x1024xf32>
    %c3 = arith.constant 3 : index
    %c0_3 = arith.constant 0 : index
    %3 = vector.load %arg1[%c3, %c0_3] : memref<4x1024xf32, #tpu.memory_space<vmem>>, vector<1x1024xf32>
    %4 = arith.mulf %0, %0 : vector<1x1024xf32>
    %5 = arith.mulf %2, %2 : vector<1x1024xf32>
    %6 = arith.addf %4, %5 : vector<1x1024xf32>
    %cst = arith.constant 1.000000e+00 : f32
    %7 = vector.broadcast %cst : f32 to vector<1x1024xf32>
    %8 = arith.cmpf ole, %6, %7 : vector<1x1024xf32>
    %cst_4 = arith.constant -1.000000e+00 : f32
    %9 = vector.broadcast %cst_4 : f32 to vector<1x1024xf32>
    %10 = arith.cmpf oge, %1, %9 : vector<1x1024xf32>
    %11 = arith.andi %8, %10 : vector<1x1024xi1>
    %cst_5 = arith.constant 1.000000e+00 : f32
    %12 = vector.broadcast %cst_5 : f32 to vector<1x1024xf32>
    %13 = arith.cmpf ole, %1, %12 : vector<1x1024xf32>
    %14 = arith.andi %11, %13 : vector<1x1024xi1>
    %cst_6 = arith.constant 1.000000e+00 : f32
    %15 = vector.broadcast %cst_6 : f32 to vector<1x1024xf32>
    %16 = arith.divf %0, %15 : vector<1x1024xf32>
    %cst_7 = arith.constant 1.000000e+00 : f32
    %17 = vector.broadcast %cst_7 : f32 to vector<1x1024xf32>
    %18 = arith.divf %2, %17 : vector<1x1024xf32>
    %cst_8 = arith.constant -1.000000e+00 : f32
    %19 = vector.broadcast %cst_8 : f32 to vector<1x1024xf32>
    %20 = arith.subf %1, %19 : vector<1x1024xf32>
    %cst_9 = arith.constant 2.000000e+00 : f32
    %21 = vector.broadcast %cst_9 : f32 to vector<1x1024xf32>
    %22 = arith.divf %20, %21 : vector<1x1024xf32>
    %cst_10 = arith.constant 2.000000e+00 : f32
    %23 = vector.broadcast %cst_10 : f32 to vector<1x1024xf32>
    %24 = arith.mulf %22, %23 : vector<1x1024xf32>
    %cst_11 = arith.constant 1.000000e+00 : f32
    %25 = vector.broadcast %cst_11 : f32 to vector<1x1024xf32>
    %26 = arith.subf %24, %25 : vector<1x1024xf32>
    %cst_12 = arith.constant 2.000000e+00 : f32
    %27 = vector.broadcast %cst_12 : f32 to vector<1x1024xf32>
    %28 = arith.mulf %3, %27 : vector<1x1024xf32>
    %cst_13 = arith.constant 1.000000e+00 : f32
    %29 = vector.broadcast %cst_13 : f32 to vector<1x1024xf32>
    %30 = arith.subf %28, %29 : vector<1x1024xf32>
    %cst_14 = arith.constant 1.000000e+00 : f32
    %31 = vector.broadcast %cst_14 : f32 to vector<1x1024xf32>
    %32 = arith.addf %16, %31 : vector<1x1024xf32>
    %cst_15 = arith.constant 3.200000e+01 : f32
    %33 = vector.broadcast %cst_15 : f32 to vector<1x1024xf32>
    %34 = arith.mulf %32, %33 : vector<1x1024xf32>
    %cst_16 = arith.constant 1.000000e+00 : f32
    %35 = vector.broadcast %cst_16 : f32 to vector<1x1024xf32>
    %36 = arith.subf %34, %35 : vector<1x1024xf32>
    %cst_17 = arith.constant 5.000000e-01 : f32
    %37 = vector.broadcast %cst_17 : f32 to vector<1x1024xf32>
    %38 = arith.mulf %36, %37 : vector<1x1024xf32>
    %cst_18 = arith.constant 1.000000e+00 : f32
    %39 = vector.broadcast %cst_18 : f32 to vector<1x1024xf32>
    %40 = arith.addf %26, %39 : vector<1x1024xf32>
    %cst_19 = arith.constant 3.200000e+01 : f32
    %41 = vector.broadcast %cst_19 : f32 to vector<1x1024xf32>
    %42 = arith.mulf %40, %41 : vector<1x1024xf32>
    %cst_20 = arith.constant 1.000000e+00 : f32
    %43 = vector.broadcast %cst_20 : f32 to vector<1x1024xf32>
    %44 = arith.subf %42, %43 : vector<1x1024xf32>
    %cst_21 = arith.constant 5.000000e-01 : f32
    %45 = vector.broadcast %cst_21 : f32 to vector<1x1024xf32>
    %46 = arith.mulf %44, %45 : vector<1x1024xf32>
    %cst_22 = arith.constant 1.000000e+00 : f32
    %47 = vector.broadcast %cst_22 : f32 to vector<1x1024xf32>
    %48 = arith.addf %18, %47 : vector<1x1024xf32>
    %cst_23 = arith.constant 3.200000e+01 : f32
    %49 = vector.broadcast %cst_23 : f32 to vector<1x1024xf32>
    %50 = arith.mulf %48, %49 : vector<1x1024xf32>
    %cst_24 = arith.constant 1.000000e+00 : f32
    %51 = vector.broadcast %cst_24 : f32 to vector<1x1024xf32>
    %52 = arith.subf %50, %51 : vector<1x1024xf32>
    %cst_25 = arith.constant 5.000000e-01 : f32
    %53 = vector.broadcast %cst_25 : f32 to vector<1x1024xf32>
    %54 = arith.mulf %52, %53 : vector<1x1024xf32>
    %cst_26 = arith.constant 1.000000e+00 : f32
    %55 = vector.broadcast %cst_26 : f32 to vector<1x1024xf32>
    %56 = arith.addf %30, %55 : vector<1x1024xf32>
    %cst_27 = arith.constant 1.600000e+01 : f32
    %57 = vector.broadcast %cst_27 : f32 to vector<1x1024xf32>
    %58 = arith.mulf %56, %57 : vector<1x1024xf32>
    %cst_28 = arith.constant 1.000000e+00 : f32
    %59 = vector.broadcast %cst_28 : f32 to vector<1x1024xf32>
    %60 = arith.subf %58, %59 : vector<1x1024xf32>
    %cst_29 = arith.constant 5.000000e-01 : f32
    %61 = vector.broadcast %cst_29 : f32 to vector<1x1024xf32>
    %62 = arith.mulf %60, %61 : vector<1x1024xf32>
    %c0_30 = arith.constant 0 : index
    %c0_31 = arith.constant 0 : index
    %63 = vector.load %arg3[%c0_30, %c0_31] : memref<128x1xf32, #tpu.memory_space<vmem>>, vector<32x1xf32>
    %64 = vector.broadcast %38 : vector<1x1024xf32> to vector<32x1024xf32>
    %65 = vector.broadcast %63 : vector<32x1xf32> to vector<32x1024xf32>
    %66 = arith.subf %64, %65 : vector<32x1024xf32>
    %67 = math.absf %66 : vector<32x1024xf32>
    %cst_32 = arith.constant 1.000000e+00 : f32
    %68 = vector.broadcast %cst_32 : f32 to vector<32x1024xf32>
    %69 = arith.subf %68, %67 : vector<32x1024xf32>
    %cst_33 = arith.constant 0.000000e+00 : f32
    %70 = vector.broadcast %cst_33 : f32 to vector<32x1024xf32>
    %71 = arith.maximumf %70, %69 : vector<32x1024xf32>
    %72 = arith.truncf %71 : vector<32x1024xf32> to vector<32x1024xbf16>
    %c0_34 = arith.constant 0 : index
    %c0_35 = arith.constant 0 : index
    %73 = vector.load %arg6[%c0_34, %c0_35] : memref<128x1024xbf16, #tpu.memory_space<vmem>>, vector<32x1024xbf16>
    tpu.vector_store %arg6[%c0_34, %c0_35], %72 {strides = array<i32>} : memref<128x1024xbf16, #tpu.memory_space<vmem>>, vector<32x1024xbf16>,
    %c32 = arith.constant 32 : index
    %c0_36 = arith.constant 0 : index
    %74 = vector.load %arg3[%c32, %c0_36] : memref<128x1xf32, #tpu.memory_space<vmem>>, vector<32x1xf32>
    %75 = vector.broadcast %46 : vector<1x1024xf32> to vector<32x1024xf32>
    %76 = vector.broadcast %74 : vector<32x1xf32> to vector<32x1024xf32>
    %77 = arith.subf %75, %76 : vector<32x1024xf32>
    %78 = math.absf %77 : vector<32x1024xf32>
    %cst_37 = arith.constant 1.000000e+00 : f32
    %79 = vector.broadcast %cst_37 : f32 to vector<32x1024xf32>
    %80 = arith.subf %79, %78 : vector<32x1024xf32>
    %cst_38 = arith.constant 0.000000e+00 : f32
    %81 = vector.broadcast %cst_38 : f32 to vector<32x1024xf32>
    %82 = arith.maximumf %81, %80 : vector<32x1024xf32>
    %83 = arith.truncf %82 : vector<32x1024xf32> to vector<32x1024xbf16>
    %c32_39 = arith.constant 32 : index
    %c0_40 = arith.constant 0 : index
    %84 = vector.load %arg6[%c32_39, %c0_40] : memref<128x1024xbf16, #tpu.memory_space<vmem>>, vector<32x1024xbf16>
    tpu.vector_store %arg6[%c32_39, %c0_40], %83 {strides = array<i32>} : memref<128x1024xbf16, #tpu.memory_space<vmem>>, vector<32x1024xbf16>,
    %c64 = arith.constant 64 : index
    %c0_41 = arith.constant 0 : index
    %85 = vector.load %arg3[%c64, %c0_41] : memref<128x1xf32, #tpu.memory_space<vmem>>, vector<32x1xf32>
    %86 = vector.broadcast %54 : vector<1x1024xf32> to vector<32x1024xf32>
    %87 = vector.broadcast %85 : vector<32x1xf32> to vector<32x1024xf32>
    %88 = arith.subf %86, %87 : vector<32x1024xf32>
    %89 = math.absf %88 : vector<32x1024xf32>
    %cst_42 = arith.constant 1.000000e+00 : f32
    %90 = vector.broadcast %cst_42 : f32 to vector<32x1024xf32>
    %91 = arith.subf %90, %89 : vector<32x1024xf32>
    %cst_43 = arith.constant 0.000000e+00 : f32
    %92 = vector.broadcast %cst_43 : f32 to vector<32x1024xf32>
    %93 = arith.maximumf %92, %91 : vector<32x1024xf32>
    %94 = arith.truncf %93 : vector<32x1024xf32> to vector<32x1024xbf16>
    %c64_44 = arith.constant 64 : index
    %c0_45 = arith.constant 0 : index
    %95 = vector.load %arg6[%c64_44, %c0_45] : memref<128x1024xbf16, #tpu.memory_space<vmem>>, vector<32x1024xbf16>
    tpu.vector_store %arg6[%c64_44, %c0_45], %94 {strides = array<i32>} : memref<128x1024xbf16, #tpu.memory_space<vmem>>, vector<32x1024xbf16>,
    %c96 = arith.constant 96 : index
    %c0_46 = arith.constant 0 : index
    %96 = vector.load %arg3[%c96, %c0_46] : memref<128x1xf32, #tpu.memory_space<vmem>>, vector<32x1xf32>
    %97 = vector.broadcast %62 : vector<1x1024xf32> to vector<32x1024xf32>
    %98 = vector.broadcast %96 : vector<32x1xf32> to vector<32x1024xf32>
    %99 = arith.subf %97, %98 : vector<32x1024xf32>
    %100 = math.absf %99 : vector<32x1024xf32>
    %cst_47 = arith.constant 1.000000e+00 : f32
    %101 = vector.broadcast %cst_47 : f32 to vector<32x1024xf32>
    %102 = arith.subf %101, %100 : vector<32x1024xf32>
    %cst_48 = arith.constant 0.000000e+00 : f32
    %103 = vector.broadcast %cst_48 : f32 to vector<32x1024xf32>
    %104 = arith.maximumf %103, %102 : vector<32x1024xf32>
    %105 = arith.truncf %104 : vector<32x1024xf32> to vector<32x1024xbf16>
    %c96_49 = arith.constant 96 : index
    %c0_50 = arith.constant 0 : index
    %106 = vector.load %arg6[%c96_49, %c0_50] : memref<128x1024xbf16, #tpu.memory_space<vmem>>, vector<32x1024xbf16>
    tpu.vector_store %arg6[%c96_49, %c0_50], %105 {strides = array<i32>} : memref<128x1024xbf16, #tpu.memory_space<vmem>>, vector<32x1024xbf16>,
    %c0_51 = arith.constant 0 : index
    %c0_52 = arith.constant 0 : index
    %107 = vector.load %arg2[%c0_51, %c0_52] : memref<128x128xbf16, #tpu.memory_space<vmem>>, vector<128x128xbf16>
    %c0_53 = arith.constant 0 : index
    %c0_54 = arith.constant 0 : index
    %108 = vector.load %arg6[%c0_53, %c0_54] : memref<128x1024xbf16, #tpu.memory_space<vmem>>, vector<128x1024xbf16>
    %cst_55 = arith.constant dense<0.000000e+00> : vector<128x1024xf32>
    %109 = tpu.matmul %107, %108, %cst_55 {dimension_numbers = #tpu.dot_dimension_numbers<[1], [0], [0], [1], [0, 0, 1, 1], [], []>} : vector<128x128xbf16>, vector<128x1024xbf16>, vector<128x1024xf32> -> vector<128x1024xf32>
    %110 = vector.extract_strided_slice %109 {offsets = [0, 0], sizes = [32, 1024], strides = [1, 1]} : vector<128x1024xf32> to vector<32x1024xf32>
    %111 = vector.extract_strided_slice %109 {offsets = [32, 0], sizes = [32, 1024], strides = [1, 1]} : vector<128x1024xf32> to vector<32x1024xf32>
    %112 = arith.mulf %110, %111 : vector<32x1024xf32>
    %113 = vector.extract_strided_slice %109 {offsets = [64, 0], sizes = [32, 1024], strides = [1, 1]} : vector<128x1024xf32> to vector<32x1024xf32>
    %114 = arith.mulf %112, %113 : vector<32x1024xf32>
    %115 = vector.extract_strided_slice %109 {offsets = [96, 0], sizes = [32, 1024], strides = [1, 1]} : vector<128x1024xf32> to vector<32x1024xf32>
    %116 = arith.mulf %114, %115 : vector<32x1024xf32>
    %c0_56 = arith.constant 0 : index
    %c0_57 = arith.constant 0 : index
    %117 = vector.load %arg4[%c0_56, %c0_57] : memref<4x32xf32, #tpu.memory_space<vmem>>, vector<4x32xf32>
    %cst_58 = arith.constant dense<0.000000e+00> : vector<4x1024xf32>
    %118 = tpu.matmul %117, %116, %cst_58 {dimension_numbers = #tpu.dot_dimension_numbers<[1], [0], [0], [1], [0, 0, 1, 1], [], []>} : vector<4x32xf32>, vector<32x1024xf32>, vector<4x1024xf32> -> vector<4x1024xf32>
    %119 = tpu.iota {dimensions = array<i32: 0>} : vector<4x1024xi32>
    %c0_i32 = arith.constant 0 : i32
    %120 = vector.broadcast %c0_i32 : i32 to vector<4x1024xi32>
    %121 = arith.cmpi eq, %119, %120 : vector<4x1024xi32>
    %cst_59 = arith.constant 0.000000e+00 : f32
    %122 = vector.broadcast %cst_59 : f32 to vector<4x1024xf32>
    %123 = arith.subf %122, %118 : vector<4x1024xf32>
    %124 = arith.select %121, %118, %123 : vector<4x1024xi1>, vector<4x1024xf32>
    %125 = math.exp %124 : vector<4x1024xf32>
    %cst_60 = arith.constant 0.000000e+00 : f32
    %126 = vector.shape_cast %14 : vector<1x1024xi1> to vector<1x1024xi1>
    %127 = vector.broadcast %126 : vector<1x1024xi1> to vector<4x1024xi1>
    %128 = vector.broadcast %cst_60 : f32 to vector<4x1024xf32>
    %129 = arith.select %127, %125, %128 : vector<4x1024xi1>, vector<4x1024xf32>
    %cst_61 = arith.constant 1.000000e+00 : f32
    %130 = vector.broadcast %cst_61 : f32 to vector<4x1024xf32>
    %131 = arith.addf %130, %125 : vector<4x1024xf32>
    %cst_62 = arith.constant 1.000000e+00 : f32
    %132 = vector.broadcast %cst_62 : f32 to vector<4x1024xf32>
    %133 = arith.divf %132, %131 : vector<4x1024xf32>
    %134 = arith.select %121, %129, %133 : vector<4x1024xi1>, vector<4x1024xf32>
    %c0_63 = arith.constant 0 : index
    %c0_64 = arith.constant 0 : index
    %135 = vector.load %arg5[%c0_63, %c0_64] : memref<4x1024xf32, #tpu.memory_space<vmem>>, vector<4x1024xf32>
    tpu.vector_store %arg5[%c0_63, %c0_64], %134 {strides = array<i32>} : memref<4x1024xf32, #tpu.memory_space<vmem>>, vector<4x1024xf32>,
    return
  }
  func.func @transform_0(%arg0: i32) -> (i32, i32) {
    %c0_i32 = arith.constant 0 : i32
    %c0_i32_0 = arith.constant 0 : i32
    return %c0_i32, %arg0 : i32, i32
  }
  func.func @transform_1(%arg0: i32) -> (i32, i32) {
    %c0_i32 = arith.constant 0 : i32
    %c0_i32_0 = arith.constant 0 : i32
    %c0_i32_1 = arith.constant 0 : i32
    return %c0_i32, %c0_i32_0 : i32, i32
  }
  func.func @transform_2(%arg0: i32) -> (i32, i32) {
    %c0_i32 = arith.constant 0 : i32
    %c0_i32_0 = arith.constant 0 : i32
    %c0_i32_1 = arith.constant 0 : i32
    return %c0_i32, %c0_i32_0 : i32, i32
  }
  func.func @transform_3(%arg0: i32) -> (i32, i32) {
    %c0_i32 = arith.constant 0 : i32
    %c0_i32_0 = arith.constant 0 : i32
    %c0_i32_1 = arith.constant 0 : i32
    return %c0_i32, %c0_i32_0 : i32, i32
  }
  func.func @transform_4(%arg0: i32) -> (i32, i32) {
    %c0_i32 = arith.constant 0 : i32
    %c0_i32_0 = arith.constant 0 : i32
    return %c0_i32, %arg0 : i32, i32
  }
}

</mosaic_0001>

<llo_original>
// kernel: tpu_custom_call.1
$region0: #{tpu_custom_call.1}
  #allocation0 [shape = 'u32[]', space=smem, size = 0x4, offset = 0x4, fixed_abs, tag = 'smem constant byte address 0x4 - core index']
  #allocation1 [shape = 'u32[144,128]{1,0:T(1,128)}', space=vmem, size = 0x12000, scoped, tag = 'internal scratch']
  #allocation2 [shape = 'bf16[128,1024]{1,0:T(16,128)(2,1)}', space=vmem, size = 0x40000, scoped, tag = 'scratch operand']
  %s0 = inlined_call_operand.vmem [shape: f32[4,4096], index: 0, kind: input, shape index: {}]
  %s1 = inlined_call_operand.hbm [shape: bf16[128,128], index: 1, kind: input, shape index: {}]
  %s2 = inlined_call_operand.vmem [shape: f32[128,1], index: 2, kind: input, shape index: {}]
  %s3 = inlined_call_operand.vmem [shape: f32[4,32], index: 3, kind: input, shape index: {}]
  %s4 = inlined_call_operand.hbm [shape: f32[4,4096], index: 4, kind: output, shape index: {}]
  %s5 = sld [smem:[#allocation0]]
  $region53: #{tpu_custom_call.1} parent=0
    _
  %s7 = ssub.s32 1, %s5
  %s8 = scalar_select 0, %s7, %s5
  $region1: #{tpu_custom_call.1} parent=0
    #allocation3 [shape = 'u8[32768]{0}', space=vmem, size = 0x8000, scoped, tag = 'input window, operand 1, single buffered']
    #allocation4 [shape = 's32[2]{0}', space=sflag, size = 0x8, scoped, tag = 'scoped memory for tpu_custom_call.1']
    #allocation5 [shape = 's32[2]{0}', space=sflag, size = 0x8, scoped, tag = 'scoped memory for tpu_custom_call.1']
    #allocation6 [shape = 'u8[32768]{0}', space=vmem, size = 0x8000, scoped, tag = 'output window, operand 0']
    %9 = vsyncpa [#allocation4], 0
    %10 = vsyncpa [#allocation5], 0
    %s11 = scalar_lea.sflag [#allocation5], 1
    %12 = vsyncpa %s11, 0
    loop: start=0, step=1, limit=6
    $region2: #{tpu_custom_call.1} parent=1 // loop_pre_header
      _
    $region3: #{tpu_custom_call.1} parent=1 // loop_header
      %s14 = sphi 0, %s18
      %p15 = scmp.ge.s32.totalorder %s14, 6
      %s24 = sphi 0, %s26
      %s27 = sphi 0, %s24
      %s28 = sphi 0, %s27
      %s44 = sphi 0, %s28
      %s48 = sphi 0, %s48
      %s50 = sphi 0, %s48
      %s51 = sphi 0, %s50
      %s65 = sphi 0, %s51
      %s69 = sphi 0, %s69
      %s71 = sphi 0, %s69
      %s72 = sphi 0, %s71
      %s86 = sphi 0, %s72
      %s90 = sphi 0, %s90
      %s92 = sphi 0, %s90
      %s93 = sphi 0, %s92
      %s107 = sphi 0, %s93
      %s113 = sphi 0, %s115
      %s116 = sphi 0, %s113
      %s117 = sphi 0, %s116
      %s133 = sphi 0, %s117
    $region4: #{tpu_custom_call.1} parent=1 // loop_header_branch
      %17 = sbr.rel (%p15) target = $region8
    $region5: #{tpu_custom_call.1} parent=1 // loop_body
      %s19 = ssub.s32 %s14, 1
      %s20 = ssub.s32 %s14, 2
      %s21 = sadd.s32 %s14, 1
      %s22 = ssub.s32 %s14, %s21
      %p23 = scmp.eq.s32.totalorder %s22, 0
      %s25 = sadd.s32 %s24, 1
      %s26 = scalar_select %p23, %s24, %s25
      %p29 = pneg %p23
      %p30 = scmp.eq.s32.totalorder %s14, 3
      %p31 = por %p29, %p30
      %p32 = scmp.ne.s32.totalorder %s24, %s27
      %p33 = scmp.eq.s32.totalorder %s14, 0
      %p34 = por %p32, %p33
      %p35 = scmp.ne.s32.totalorder %s24, %s27
      %p36 = scmp.eq.s32.totalorder %s19, 3
      %p37 = por %p35, %p36
      %p38 = scmp.ne.s32.totalorder %s27, %s28
      %p39 = scmp.eq.s32.totalorder %s19, 0
      %p40 = por %p38, %p39
      %p41 = scmp.ne.s32.totalorder %s27, %s28
      %p42 = scmp.eq.s32.totalorder %s20, 3
      %p43 = por %p41, %p42
      %p45 = scmp.ne.s32.totalorder %s28, %s44
      %p46 = scmp.eq.s32.totalorder %s20, 0
      %p47 = por %p45, %p46
      %s49 = sadd.s32 %s48, 1
      %p52 = scmp.eq.s32.totalorder %s14, 3
      %p53 = scmp.ne.s32.totalorder %s48, %s50
      %p54 = scmp.eq.s32.totalorder %s14, 0
      %p55 = por %p53, %p54
      %p56 = scmp.ne.s32.totalorder %s48, %s50
      %p57 = scmp.eq.s32.totalorder %s19, 3
      %p58 = por %p56, %p57
      %p59 = scmp.ne.s32.totalorder %s50, %s51
      %p60 = scmp.eq.s32.totalorder %s19, 0
      %p61 = por %p59, %p60
      %p62 = scmp.ne.s32.totalorder %s50, %s51
      %p63 = scmp.eq.s32.totalorder %s20, 3
      %p64 = por %p62, %p63
      %p66 = scmp.ne.s32.totalorder %s51, %s65
      %p67 = scmp.eq.s32.totalorder %s20, 0
      %p68 = por %p66, %p67
      %s70 = sadd.s32 %s69, 1
      %p73 = scmp.eq.s32.totalorder %s14, 3
      %p74 = scmp.ne.s32.totalorder %s69, %s71
      %p75 = scmp.eq.s32.totalorder %s14, 0
      %p76 = por %p74, %p75
      %p77 = scmp.ne.s32.totalorder %s69, %s71
      %p78 = scmp.eq.s32.totalorder %s19, 3
      %p79 = por %p77, %p78
      %p80 = scmp.ne.s32.totalorder %s71, %s72
      %p81 = scmp.eq.s32.totalorder %s19, 0
      %p82 = por %p80, %p81
      %p83 = scmp.ne.s32.totalorder %s71, %s72
      %p84 = scmp.eq.s32.totalorder %s20, 3
      %p85 = por %p83, %p84
      %p87 = scmp.ne.s32.totalorder %s72, %s86
      %p88 = scmp.eq.s32.totalorder %s20, 0
      %p89 = por %p87, %p88
      %s91 = sadd.s32 %s90, 1
      %p94 = scmp.eq.s32.totalorder %s14, 3
      %p95 = scmp.ne.s32.totalorder %s90, %s92
      %p96 = scmp.eq.s32.totalorder %s14, 0
      %p97 = por %p95, %p96
      %p98 = scmp.ne.s32.totalorder %s90, %s92
      %p99 = scmp.eq.s32.totalorder %s19, 3
      %p100 = por %p98, %p99
      %p101 = scmp.ne.s32.totalorder %s92, %s93
      %p102 = scmp.eq.s32.totalorder %s19, 0
      %p103 = por %p101, %p102
      %p104 = scmp.ne.s32.totalorder %s92, %s93
      %p105 = scmp.eq.s32.totalorder %s20, 3
      %p106 = por %p104, %p105
      %p108 = scmp.ne.s32.totalorder %s93, %s107
      %p109 = scmp.eq.s32.totalorder %s20, 0
      %p110 = por %p108, %p109
      %s111 = ssub.s32 %s14, %s21
      %p112 = scmp.eq.s32.totalorder %s111, 0
      %s114 = sadd.s32 %s113, 1
      %s115 = scalar_select %p112, %s113, %s114
      %p118 = pneg %p112
      %p119 = scmp.eq.s32.totalorder %s14, 3
      %p120 = por %p118, %p119
      %p121 = scmp.ne.s32.totalorder %s113, %s116
      %p122 = scmp.eq.s32.totalorder %s14, 0
      %p123 = por %p121, %p122
      %p124 = scmp.ne.s32.totalorder %s113, %s116
      %p125 = scmp.eq.s32.totalorder %s19, 3
      %p126 = por %p124, %p125
      %p127 = scmp.ne.s32.totalorder %s116, %s117
      %p128 = scmp.eq.s32.totalorder %s19, 0
      %p129 = por %p127, %p128
      %p130 = scmp.ne.s32.totalorder %s116, %s117
      %p131 = scmp.eq.s32.totalorder %s20, 3
      %p132 = por %p130, %p131
      %p134 = scmp.ne.s32.totalorder %s117, %s133
      %p135 = scmp.eq.s32.totalorder %s20, 0
      %p136 = por %p134, %p135
      %p137 = scmp.le.s32.totalorder 1, %s14
      %p138 = scmp.lt.s32.totalorder %s14, 5
      %p139 = pnand %p137, %p138
      %p140 = pneg %p139
      // Predicated region
      $region9: #{tpu_custom_call.1} parent=5 // pred_check
        _
      $region10: #{tpu_custom_call.1} parent=5 // pred_check_branch
        %142 = sbr.rel (%p139) target = $region12
      $region11: #{tpu_custom_call.1} parent=5 // pred_region
        %s143 = ssub.s32 %s14, 1
        // Predicated region
        $region13: #{tpu_custom_call.1} parent=11 // pred_check
          %p144 = pneg %p61
        $region14: #{tpu_custom_call.1} parent=11 // pred_check_branch
          %146 = sbr.rel (%p144) target = $region16
        $region15: #{tpu_custom_call.1} parent=11 // pred_region
          %s148 = ssub.s32 1024, 1024
          %149 = vsyncadd [#allocation4], %s148
          %s150 = sshll.u32 [#allocation3], 4
          %s151 = int_to_ptr.vmem [resolvable:$true] %s150
          %156 = dma.hbm_to_vmem [thread:$0]  %s1, 1024, %s151, [#allocation4], 64, 64, 4
        $region16: #{tpu_custom_call.1} parent=11 // pred_fallthru
          _
        // Predicated region
        $region17: #{tpu_custom_call.1} parent=11 // pred_check
          %p157 = pneg %p82
        $region18: #{tpu_custom_call.1} parent=11 // pred_check_branch
          %159 = sbr.rel (%p157) target = $region20
        $region19: #{tpu_custom_call.1} parent=11 // pred_region
          _
        $region20: #{tpu_custom_call.1} parent=11 // pred_fallthru
          _
        // Predicated region
        $region21: #{tpu_custom_call.1} parent=11 // pred_check
          %p160 = pneg %p103
        $region22: #{tpu_custom_call.1} parent=11 // pred_check_branch
          %162 = sbr.rel (%p160) target = $region24
        $region23: #{tpu_custom_call.1} parent=11 // pred_region
          _
        $region24: #{tpu_custom_call.1} parent=11 // pred_fallthru
          _
      $region12: #{tpu_custom_call.1} parent=5 // pred_fallthru
        _
      %p163 = scmp.lt.s32.totalorder %s14, 4
      // Predicated region
      $region25: #{tpu_custom_call.1} parent=5 // pred_check
        %p164 = pneg %p163
      $region26: #{tpu_custom_call.1} parent=5 // pred_check_branch
        %166 = sbr.rel (%p164) target = $region28
      $region27: #{tpu_custom_call.1} parent=5 // pred_region
        // Predicated region
        $region29: #{tpu_custom_call.1} parent=27 // pred_check
          %p167 = pneg %p34
        $region30: #{tpu_custom_call.1} parent=27 // pred_check_branch
          %169 = sbr.rel (%p167) target = $region32
        $region31: #{tpu_custom_call.1} parent=27 // pred_region
          %s170 = smul.u32 8, %s14
          %p171 = scmp.lt.s32.totalorder %s170, 31
          %s172 = scalar_select %p171, %s170, 31
          %s173 = smul.addr %s172, 4
          %s174 = scalar_lea.vmem %s0, %s173
          %s175 = smul.u32 8, %s14
        $region32: #{tpu_custom_call.1} parent=27 // pred_fallthru
          _
      $region28: #{tpu_custom_call.1} parent=5 // pred_fallthru
        _
      %p176 = scmp.le.s32.totalorder 1, %s14
      %p177 = scmp.lt.s32.totalorder %s14, 5
      %p178 = pnand %p176, %p177
      %p179 = pneg %p178
      // Predicated region
      $region33: #{tpu_custom_call.1} parent=5 // pred_check
        _
      $region34: #{tpu_custom_call.1} parent=5 // pred_check_branch
        %181 = sbr.rel (%p178) target = $region36
      $region35: #{tpu_custom_call.1} parent=5 // pred_region
        %s182 = ssub.s32 %s14, 1
        // Predicated region
        $region37: #{tpu_custom_call.1} parent=35 // pred_check
          %p183 = pneg %p61
        $region38: #{tpu_custom_call.1} parent=35 // pred_check_branch
          %185 = sbr.rel (%p183) target = $region40
        $region39: #{tpu_custom_call.1} parent=35 // pred_region
          %186 = dma.done [#allocation4], 1024
        $region40: #{tpu_custom_call.1} parent=35 // pred_fallthru
          _
        %s187 = smul.u32 8, %s19
        %p188 = scmp.lt.s32.totalorder %s187, 31
        %s189 = scalar_select %p188, %s187, 31
        %s190 = smul.addr %s189, 4
        %s191 = scalar_lea.vmem %s0, %s190
        %p192 = pneg %p40
        %p193 = pneg %p37
        %p194 = pneg %p61
        %p195 = pneg %p58
        %p196 = pneg %p82
        %p197 = pneg %p79
        %p198 = pneg %p103
        %p199 = pneg %p100
        %p200 = pneg %p129
        %p201 = pneg %p126
        %s202 = sand.u32 %s116, 1
        %s203 = scalar_lea.sflag [#allocation5], %s202
        %s204 = sand.u32 %s116, 1
        %s205 = smul.addr %s204, 32
        %s206 = scalar_lea.vmem [#allocation6], %s205
        %s207 = smul.u32 8, %s19
        %p208 = scmp.lt.s32.totalorder %s207, 31
        %s209 = scalar_select %p208, %s207, 31
        %s210 = smul.addr %s209, 4
        %s211 = scalar_lea.vmem %s0, %s210
        %s212 = smul.u32 8, %s19
        %s213 = smul.u32 8, %s19
        %v215 = vld [vmem:[%s211] ss:$4 sm:$0xff]
        %s216 = scalar_lea.vmem %s211, 1
        %v217 = vld [vmem:[%s216] ss:$4 sm:$0xff]
        %s218 = scalar_lea.vmem %s211, 2
        %v219 = vld [vmem:[%s218] ss:$4 sm:$0xff]
        %s220 = scalar_lea.vmem %s211, 3
        %v221 = vld [vmem:[%s220] ss:$4 sm:$0xff]
        %v222 = vmul.f32 %v215, %v215
        %v223 = vmul.f32 %v219, %v219
        %v224 = vadd.f32 %v222, %v223
        %vm225 = vcmp.le.f32.partialorder %v224, 1.0
        %vm226 = vcmp.ge.f32.partialorder %v217, -1.0
        %vm227 = vmand %vm225, %vm226
        %vm228 = vcmp.le.f32.partialorder %v217, 1.0
        %vm229 = vmand %vm227, %vm228
        %v230 = vsub.f32 %v217, -1.0
        %v231 = vrcp.pop 2.0
        %v232 = vmul.f32 %v230, %v231
        %v233 = vmul.f32 %v232, 2.0
        %v234 = vsub.f32 %v233, 1.0
        %v235 = vmul.f32 %v221, 2.0
        %v236 = vsub.f32 %v235, 1.0
        %v237 = vadd.f32 %v215, 1.0
        %v238 = vmul.f32 %v237, 32.0
        %v239 = vsub.f32 %v238, 1.0
        %v240 = vmul.f32 %v239, 0.5
        %v241 = vadd.f32 %v234, 1.0
        %v242 = vmul.f32 %v241, 32.0
        %v243 = vsub.f32 %v242, 1.0
        %v244 = vmul.f32 %v243, 0.5
        %v245 = vadd.f32 %v219, 1.0
        %v246 = vmul.f32 %v245, 32.0
        %v247 = vsub.f32 %v246, 1.0
        %v248 = vmul.f32 %v247, 0.5
        %v249 = vadd.f32 %v236, 1.0
        %v250 = vmul.f32 %v249, 16.0
        %v251 = vsub.f32 %v250, 1.0
        %v252 = vmul.f32 %v251, 0.5
        %v253 = vld [vmem:[%s2] sm:$0xff]
        %v254 = vld [vmem:[%s2 + $0x8] sm:$0xff]
        %v255 = vld [vmem:[%s2 + $0x10] sm:$0xff]
        %v256 = vld [vmem:[%s2 + $0x18] sm:$0xff]
        %v258 = vlaneseq
        %v259 = vshrl.u32 %v258, 7
        %v260 = vsub.s32 0, %v259
        %v261 = vrot.slane %v240, %v260
        %v262 = vlaneseq
        %v263 = vshrl.u32 %v262, 7
        %v264 = vsub.s32 1, %v263
        %v265 = vrot.slane %v240, %v264
        %v266 = vlaneseq
        %v267 = vshrl.u32 %v266, 7
        %v268 = vsub.s32 2, %v267
        %v269 = vrot.slane %v240, %v268
        %v270 = vlaneseq
        %v271 = vshrl.u32 %v270, 7
        %v272 = vsub.s32 3, %v271
        %v273 = vrot.slane %v240, %v272
        %v274 = vlaneseq
        %v275 = vshrl.u32 %v274, 7
        %v276 = vsub.s32 4, %v275
        %v277 = vrot.slane %v240, %v276
        %v278 = vlaneseq
        %v279 = vshrl.u32 %v278, 7
        %v280 = vsub.s32 5, %v279
        %v281 = vrot.slane %v240, %v280
        %v282 = vlaneseq
        %v283 = vshrl.u32 %v282, 7
        %v284 = vsub.s32 6, %v283
        %v285 = vrot.slane %v240, %v284
        %v286 = vlaneseq
        %v287 = vshrl.u32 %v286, 7
        %v288 = vsub.s32 7, %v287
        %v289 = vrot.slane %v240, %v288
        %299 = vset.pattern.permute.xlu0 0
        %300 = vperm.xlu0 %299, %v253
        %v301 = vpop.permute.xlu0 %300
        %304 = vset.pattern.permute.xlu0 0
        %305 = vperm.xlu0 %304, %v254
        %v306 = vpop.permute.xlu0 %305
        %309 = vset.pattern.permute.xlu0 0
        %310 = vperm.xlu0 %309, %v255
        %v311 = vpop.permute.xlu0 %310
        %314 = vset.pattern.permute.xlu0 0
        %315 = vperm.xlu0 %314, %v256
        %v316 = vpop.permute.xlu0 %315
        %v318 = vsub.f32 %v261, %v301
        %v319 = vsub.f32 %v265, %v301
        %v320 = vsub.f32 %v269, %v301
        %v321 = vsub.f32 %v273, %v301
        %v322 = vsub.f32 %v277, %v301
        %v323 = vsub.f32 %v281, %v301
        %v324 = vsub.f32 %v285, %v301
        %v325 = vsub.f32 %v289, %v301
        %v326 = vsub.f32 %v261, %v306
        %v327 = vsub.f32 %v265, %v306
        %v328 = vsub.f32 %v269, %v306
        %v329 = vsub.f32 %v273, %v306
        %v330 = vsub.f32 %v277, %v306
        %v331 = vsub.f32 %v281, %v306
        %v332 = vsub.f32 %v285, %v306
        %v333 = vsub.f32 %v289, %v306
        %v334 = vsub.f32 %v261, %v311
        %v335 = vsub.f32 %v265, %v311
        %v336 = vsub.f32 %v269, %v311
        %v337 = vsub.f32 %v273, %v311
        %v338 = vsub.f32 %v277, %v311
        %v339 = vsub.f32 %v281, %v311
        %v340 = vsub.f32 %v285, %v311
        %v341 = vsub.f32 %v289, %v311
        %v342 = vsub.f32 %v261, %v316
        %v343 = vsub.f32 %v265, %v316
        %v344 = vsub.f32 %v269, %v316
        %v345 = vsub.f32 %v273, %v316
        %v346 = vsub.f32 %v277, %v316
        %v347 = vsub.f32 %v281, %v316
        %v348 = vsub.f32 %v285, %v316
        %v349 = vsub.f32 %v289, %v316
        %v350 = vand.u32 2147483647, %v318
        %v351 = vand.u32 2147483647, %v319
        %v352 = vand.u32 2147483647, %v320
        %v353 = vand.u32 2147483647, %v321
        %v354 = vand.u32 2147483647, %v322
        %v355 = vand.u32 2147483647, %v323
        %v356 = vand.u32 2147483647, %v324
        %v357 = vand.u32 2147483647, %v325
        %v358 = vand.u32 2147483647, %v326
        %v359 = vand.u32 2147483647, %v327
        %v360 = vand.u32 2147483647, %v328
        %v361 = vand.u32 2147483647, %v329
        %v362 = vand.u32 2147483647, %v330
        %v363 = vand.u32 2147483647, %v331
        %v364 = vand.u32 2147483647, %v332
        %v365 = vand.u32 2147483647, %v333
        %v366 = vand.u32 2147483647, %v334
        %v367 = vand.u32 2147483647, %v335
        %v368 = vand.u32 2147483647, %v336
        %v369 = vand.u32 2147483647, %v337
        %v370 = vand.u32 2147483647, %v338
        %v371 = vand.u32 2147483647, %v339
        %v372 = vand.u32 2147483647, %v340
        %v373 = vand.u32 2147483647, %v341
        %v374 = vand.u32 2147483647, %v342
        %v375 = vand.u32 2147483647, %v343
        %v376 = vand.u32 2147483647, %v344
        %v377 = vand.u32 2147483647, %v345
        %v378 = vand.u32 2147483647, %v346
        %v379 = vand.u32 2147483647, %v347
        %v380 = vand.u32 2147483647, %v348
        %v381 = vand.u32 2147483647, %v349
        %v382 = vsub.f32 1.0, %v350
        %v383 = vsub.f32 1.0, %v351
        %v384 = vsub.f32 1.0, %v352
        %v385 = vsub.f32 1.0, %v353
        %v386 = vsub.f32 1.0, %v354
        %v387 = vsub.f32 1.0, %v355
        %v388 = vsub.f32 1.0, %v356
        %v389 = vsub.f32 1.0, %v357
        %v390 = vsub.f32 1.0, %v358
        %v391 = vsub.f32 1.0, %v359
        %v392 = vsub.f32 1.0, %v360
        %v393 = vsub.f32 1.0, %v361
        %v394 = vsub.f32 1.0, %v362
        %v395 = vsub.f32 1.0, %v363
        %v396 = vsub.f32 1.0, %v364
        %v397 = vsub.f32 1.0, %v365
        %v398 = vsub.f32 1.0, %v366
        %v399 = vsub.f32 1.0, %v367
        %v400 = vsub.f32 1.0, %v368
        %v401 = vsub.f32 1.0, %v369
        %v402 = vsub.f32 1.0, %v370
        %v403 = vsub.f32 1.0, %v371
        %v404 = vsub.f32 1.0, %v372
        %v405 = vsub.f32 1.0, %v373
        %v406 = vsub.f32 1.0, %v374
        %v407 = vsub.f32 1.0, %v375
        %v408 = vsub.f32 1.0, %v376
        %v409 = vsub.f32 1.0, %v377
        %v410 = vsub.f32 1.0, %v378
        %v411 = vsub.f32 1.0, %v379
        %v412 = vsub.f32 1.0, %v380
        %v413 = vsub.f32 1.0, %v381
        %v414 = vmax.f32 %v382, 0.0
        %v415 = vmax.f32 %v383, 0.0
        %v416 = vmax.f32 %v384, 0.0
        %v417 = vmax.f32 %v385, 0.0
        %v418 = vmax.f32 %v386, 0.0
        %v419 = vmax.f32 %v387, 0.0
        %v420 = vmax.f32 %v388, 0.0
        %v421 = vmax.f32 %v389, 0.0
        %v422 = vmax.f32 %v390, 0.0
        %v423 = vmax.f32 %v391, 0.0
        %v424 = vmax.f32 %v392, 0.0
        %v425 = vmax.f32 %v393, 0.0
        %v426 = vmax.f32 %v394, 0.0
        %v427 = vmax.f32 %v395, 0.0
        %v428 = vmax.f32 %v396, 0.0
        %v429 = vmax.f32 %v397, 0.0
        %v430 = vmax.f32 %v398, 0.0
        %v431 = vmax.f32 %v399, 0.0
        %v432 = vmax.f32 %v400, 0.0
        %v433 = vmax.f32 %v401, 0.0
        %v434 = vmax.f32 %v402, 0.0
        %v435 = vmax.f32 %v403, 0.0
        %v436 = vmax.f32 %v404, 0.0
        %v437 = vmax.f32 %v405, 0.0
        %v438 = vmax.f32 %v406, 0.0
        %v439 = vmax.f32 %v407, 0.0
        %v440 = vmax.f32 %v408, 0.0
        %v441 = vmax.f32 %v409, 0.0
        %v442 = vmax.f32 %v410, 0.0
        %v443 = vmax.f32 %v411, 0.0
        %v444 = vmax.f32 %v412, 0.0
        %v445 = vmax.f32 %v413, 0.0
        %v446 = vpack.c.bf16 %v422, %v414
        %v447 = vpack.c.bf16 %v423, %v415
        %v448 = vpack.c.bf16 %v424, %v416
        %v449 = vpack.c.bf16 %v425, %v417
        %v450 = vpack.c.bf16 %v426, %v418
        %v451 = vpack.c.bf16 %v427, %v419
        %v452 = vpack.c.bf16 %v428, %v420
        %v453 = vpack.c.bf16 %v429, %v421
        %v454 = vpack.c.bf16 %v438, %v430
        %v455 = vpack.c.bf16 %v439, %v431
        %v456 = vpack.c.bf16 %v440, %v432
        %v457 = vpack.c.bf16 %v441, %v433
        %v458 = vpack.c.bf16 %v442, %v434
        %v459 = vpack.c.bf16 %v443, %v435
        %v460 = vpack.c.bf16 %v444, %v436
        %v461 = vpack.c.bf16 %v445, %v437
        %462 = vst [vmem:[#allocation2] sm:$0xff] %v446
        %463 = vst [vmem:[#allocation2 + $0x8] sm:$0xff] %v447
        %464 = vst [vmem:[#allocation2 + $0x10] sm:$0xff] %v448
        %465 = vst [vmem:[#allocation2 + $0x18] sm:$0xff] %v449
        %466 = vst [vmem:[#allocation2 + $0x20] sm:$0xff] %v450
        %467 = vst [vmem:[#allocation2 + $0x28] sm:$0xff] %v451
        %468 = vst [vmem:[#allocation2 + $0x30] sm:$0xff] %v452
        %469 = vst [vmem:[#allocation2 + $0x38] sm:$0xff] %v453
        %470 = vst [vmem:[#allocation2 + $0x40] sm:$0xff] %v454
        %471 = vst [vmem:[#allocation2 + $0x48] sm:$0xff] %v455
        %472 = vst [vmem:[#allocation2 + $0x50] sm:$0xff] %v456
        %473 = vst [vmem:[#allocation2 + $0x58] sm:$0xff] %v457
        %474 = vst [vmem:[#allocation2 + $0x60] sm:$0xff] %v458
        %475 = vst [vmem:[#allocation2 + $0x68] sm:$0xff] %v459
        %476 = vst [vmem:[#allocation2 + $0x70] sm:$0xff] %v460
        %477 = vst [vmem:[#allocation2 + $0x78] sm:$0xff] %v461
        %v478 = vld [vmem:[%s2 + $0x20] sm:$0xff]
        %v479 = vld [vmem:[%s2 + $0x28] sm:$0xff]
        %v480 = vld [vmem:[%s2 + $0x30] sm:$0xff]
        %v481 = vld [vmem:[%s2 + $0x38] sm:$0xff]
        %v483 = vlaneseq
        %v484 = vshrl.u32 %v483, 7
        %v485 = vsub.s32 0, %v484
        %v486 = vrot.slane %v244, %v485
        %v487 = vlaneseq
        %v488 = vshrl.u32 %v487, 7
        %v489 = vsub.s32 1, %v488
        %v490 = vrot.slane %v244, %v489
        %v491 = vlaneseq
        %v492 = vshrl.u32 %v491, 7
        %v493 = vsub.s32 2, %v492
        %v494 = vrot.slane %v244, %v493
        %v495 = vlaneseq
        %v496 = vshrl.u32 %v495, 7
        %v497 = vsub.s32 3, %v496
        %v498 = vrot.slane %v244, %v497
        %v499 = vlaneseq
        %v500 = vshrl.u32 %v499, 7
        %v501 = vsub.s32 4, %v500
        %v502 = vrot.slane %v244, %v501
        %v503 = vlaneseq
        %v504 = vshrl.u32 %v503, 7
        %v505 = vsub.s32 5, %v504
        %v506 = vrot.slane %v244, %v505
        %v507 = vlaneseq
        %v508 = vshrl.u32 %v507, 7
        %v509 = vsub.s32 6, %v508
        %v510 = vrot.slane %v244, %v509
        %v511 = vlaneseq
        %v512 = vshrl.u32 %v511, 7
        %v513 = vsub.s32 7, %v512
        %v514 = vrot.slane %v244, %v513
        %524 = vset.pattern.permute.xlu0 0
        %525 = vperm.xlu0 %524, %v478
        %v526 = vpop.permute.xlu0 %525
        %529 = vset.pattern.permute.xlu0 0
        %530 = vperm.xlu0 %529, %v479
        %v531 = vpop.permute.xlu0 %530
        %534 = vset.pattern.permute.xlu0 0
        %535 = vperm.xlu0 %534, %v480
        %v536 = vpop.permute.xlu0 %535
        %539 = vset.pattern.permute.xlu0 0
        %540 = vperm.xlu0 %539, %v481
        %v541 = vpop.permute.xlu0 %540
        %v543 = vsub.f32 %v486, %v526
        %v544 = vsub.f32 %v490, %v526
        %v545 = vsub.f32 %v494, %v526
        %v546 = vsub.f32 %v498, %v526
        %v547 = vsub.f32 %v502, %v526
        %v548 = vsub.f32 %v506, %v526
        %v549 = vsub.f32 %v510, %v526
        %v550 = vsub.f32 %v514, %v526
        %v551 = vsub.f32 %v486, %v531
        %v552 = vsub.f32 %v490, %v531
        %v553 = vsub.f32 %v494, %v531
        %v554 = vsub.f32 %v498, %v531
        %v555 = vsub.f32 %v502, %v531
        %v556 = vsub.f32 %v506, %v531
        %v557 = vsub.f32 %v510, %v531
        %v558 = vsub.f32 %v514, %v531
        %v559 = vsub.f32 %v486, %v536
        %v560 = vsub.f32 %v490, %v536
        %v561 = vsub.f32 %v494, %v536
        %v562 = vsub.f32 %v498, %v536
        %v563 = vsub.f32 %v502, %v536
        %v564 = vsub.f32 %v506, %v536
        %v565 = vsub.f32 %v510, %v536
        %v566 = vsub.f32 %v514, %v536
        %v567 = vsub.f32 %v486, %v541
        %v568 = vsub.f32 %v490, %v541
        %v569 = vsub.f32 %v494, %v541
        %v570 = vsub.f32 %v498, %v541
        %v571 = vsub.f32 %v502, %v541
        %v572 = vsub.f32 %v506, %v541
        %v573 = vsub.f32 %v510, %v541
        %v574 = vsub.f32 %v514, %v541
        %v575 = vand.u32 2147483647, %v543
        %v576 = vand.u32 2147483647, %v544
        %v577 = vand.u32 2147483647, %v545
        %v578 = vand.u32 2147483647, %v546
        %v579 = vand.u32 2147483647, %v547
        %v580 = vand.u32 2147483647, %v548
        %v581 = vand.u32 2147483647, %v549
        %v582 = vand.u32 2147483647, %v550
        %v583 = vand.u32 2147483647, %v551
        %v584 = vand.u32 2147483647, %v552
        %v585 = vand.u32 2147483647, %v553
        %v586 = vand.u32 2147483647, %v554
        %v587 = vand.u32 2147483647, %v555
        %v588 = vand.u32 2147483647, %v556
        %v589 = vand.u32 2147483647, %v557
        %v590 = vand.u32 2147483647, %v558
        %v591 = vand.u32 2147483647, %v559
        %v592 = vand.u32 2147483647, %v560
        %v593 = vand.u32 2147483647, %v561
        %v594 = vand.u32 2147483647, %v562
        %v595 = vand.u32 2147483647, %v563
        %v596 = vand.u32 2147483647, %v564
        %v597 = vand.u32 2147483647, %v565
        %v598 = vand.u32 2147483647, %v566
        %v599 = vand.u32 2147483647, %v567
        %v600 = vand.u32 2147483647, %v568
        %v601 = vand.u32 2147483647, %v569
        %v602 = vand.u32 2147483647, %v570
        %v603 = vand.u32 2147483647, %v571
        %v604 = vand.u32 2147483647, %v572
        %v605 = vand.u32 2147483647, %v573
        %v606 = vand.u32 2147483647, %v574
        %v607 = vsub.f32 1.0, %v575
        %v608 = vsub.f32 1.0, %v576
        %v609 = vsub.f32 1.0, %v577
        %v610 = vsub.f32 1.0, %v578
        %v611 = vsub.f32 1.0, %v579
        %v612 = vsub.f32 1.0, %v580
        %v613 = vsub.f32 1.0, %v581
        %v614 = vsub.f32 1.0, %v582
        %v615 = vsub.f32 1.0, %v583
        %v616 = vsub.f32 1.0, %v584
        %v617 = vsub.f32 1.0, %v585
        %v618 = vsub.f32 1.0, %v586
        %v619 = vsub.f32 1.0, %v587
        %v620 = vsub.f32 1.0, %v588
        %v621 = vsub.f32 1.0, %v589
        %v622 = vsub.f32 1.0, %v590
        %v623 = vsub.f32 1.0, %v591
        %v624 = vsub.f32 1.0, %v592
        %v625 = vsub.f32 1.0, %v593
        %v626 = vsub.f32 1.0, %v594
        %v627 = vsub.f32 1.0, %v595
        %v628 = vsub.f32 1.0, %v596
        %v629 = vsub.f32 1.0, %v597
        %v630 = vsub.f32 1.0, %v598
        %v631 = vsub.f32 1.0, %v599
        %v632 = vsub.f32 1.0, %v600
        %v633 = vsub.f32 1.0, %v601
        %v634 = vsub.f32 1.0, %v602
        %v635 = vsub.f32 1.0, %v603
        %v636 = vsub.f32 1.0, %v604
        %v637 = vsub.f32 1.0, %v605
        %v638 = vsub.f32 1.0, %v606
        %v639 = vmax.f32 %v607, 0.0
        %v640 = vmax.f32 %v608, 0.0
        %v641 = vmax.f32 %v609, 0.0
        %v642 = vmax.f32 %v610, 0.0
        %v643 = vmax.f32 %v611, 0.0
        %v644 = vmax.f32 %v612, 0.0
        %v645 = vmax.f32 %v613, 0.0
        %v646 = vmax.f32 %v614, 0.0
        %v647 = vmax.f32 %v615, 0.0
        %v648 = vmax.f32 %v616, 0.0
        %v649 = vmax.f32 %v617, 0.0
        %v650 = vmax.f32 %v618, 0.0
        %v651 = vmax.f32 %v619, 0.0
        %v652 = vmax.f32 %v620, 0.0
        %v653 = vmax.f32 %v621, 0.0
        %v654 = vmax.f32 %v622, 0.0
        %v655 = vmax.f32 %v623, 0.0
        %v656 = vmax.f32 %v624, 0.0
        %v657 = vmax.f32 %v625, 0.0
        %v658 = vmax.f32 %v626, 0.0
        %v659 = vmax.f32 %v627, 0.0
        %v660 = vmax.f32 %v628, 0.0
        %v661 = vmax.f32 %v629, 0.0
        %v662 = vmax.f32 %v630, 0.0
        %v663 = vmax.f32 %v631, 0.0
        %v664 = vmax.f32 %v632, 0.0
        %v665 = vmax.f32 %v633, 0.0
        %v666 = vmax.f32 %v634, 0.0
        %v667 = vmax.f32 %v635, 0.0
        %v668 = vmax.f32 %v636, 0.0
        %v669 = vmax.f32 %v637, 0.0
        %v670 = vmax.f32 %v638, 0.0
        %v671 = vpack.c.bf16 %v647, %v639
        %v672 = vpack.c.bf16 %v648, %v640
        %v673 = vpack.c.bf16 %v649, %v641
        %v674 = vpack.c.bf16 %v650, %v642
        %v675 = vpack.c.bf16 %v651, %v643
        %v676 = vpack.c.bf16 %v652, %v644
        %v677 = vpack.c.bf16 %v653, %v645
        %v678 = vpack.c.bf16 %v654, %v646
        %v679 = vpack.c.bf16 %v663, %v655
        %v680 = vpack.c.bf16 %v664, %v656
        %v681 = vpack.c.bf16 %v665, %v657
        %v682 = vpack.c.bf16 %v666, %v658
        %v683 = vpack.c.bf16 %v667, %v659
        %v684 = vpack.c.bf16 %v668, %v660
        %v685 = vpack.c.bf16 %v669, %v661
        %v686 = vpack.c.bf16 %v670, %v662
        %687 = vst [vmem:[#allocation2 + $0x80] sm:$0xff] %v671
        %688 = vst [vmem:[#allocation2 + $0x88] sm:$0xff] %v672
        %689 = vst [vmem:[#allocation2 + $0x90] sm:$0xff] %v673
        %690 = vst [vmem:[#allocation2 + $0x98] sm:$0xff] %v674
        %691 = vst [vmem:[#allocation2 + $0xa0] sm:$0xff] %v675
        %692 = vst [vmem:[#allocation2 + $0xa8] sm:$0xff] %v676
        %693 = vst [vmem:[#allocation2 + $0xb0] sm:$0xff] %v677
        %694 = vst [vmem:[#allocation2 + $0xb8] sm:$0xff] %v678
        %695 = vst [vmem:[#allocation2 + $0xc0] sm:$0xff] %v679
        %696 = vst [vmem:[#allocation2 + $0xc8] sm:$0xff] %v680
        %697 = vst [vmem:[#allocation2 + $0xd0] sm:$0xff] %v681
        %698 = vst [vmem:[#allocation2 + $0xd8] sm:$0xff] %v682
        %699 = vst [vmem:[#allocation2 + $0xe0] sm:$0xff] %v683
        %700 = vst [vmem:[#allocation2 + $0xe8] sm:$0xff] %v684
        %701 = vst [vmem:[#allocation2 + $0xf0] sm:$0xff] %v685
        %702 = vst [vmem:[#allocation2 + $0xf8] sm:$0xff] %v686
        %v703 = vld [vmem:[%s2 + $0x40] sm:$0xff]
        %v704 = vld [vmem:[%s2 + $0x48] sm:$0xff]
        %v705 = vld [vmem:[%s2 + $0x50] sm:$0xff]
        %v706 = vld [vmem:[%s2 + $0x58] sm:$0xff]
        %v708 = vlaneseq
        %v709 = vshrl.u32 %v708, 7
        %v710 = vsub.s32 0, %v709
        %v711 = vrot.slane %v248, %v710
        %v712 = vlaneseq
        %v713 = vshrl.u32 %v712, 7
        %v714 = vsub.s32 1, %v713
        %v715 = vrot.slane %v248, %v714
        %v716 = vlaneseq
        %v717 = vshrl.u32 %v716, 7
        %v718 = vsub.s32 2, %v717
        %v719 = vrot.slane %v248, %v718
        %v720 = vlaneseq
        %v721 = vshrl.u32 %v720, 7
        %v722 = vsub.s32 3, %v721
        %v723 = vrot.slane %v248, %v722
        %v724 = vlaneseq
        %v725 = vshrl.u32 %v724, 7
        %v726 = vsub.s32 4, %v725
        %v727 = vrot.slane %v248, %v726
        %v728 = vlaneseq
        %v729 = vshrl.u32 %v728, 7
        %v730 = vsub.s32 5, %v729
        %v731 = vrot.slane %v248, %v730
        %v732 = vlaneseq
        %v733 = vshrl.u32 %v732, 7
        %v734 = vsub.s32 6, %v733
        %v735 = vrot.slane %v248, %v734
        %v736 = vlaneseq
        %v737 = vshrl.u32 %v736, 7
        %v738 = vsub.s32 7, %v737
        %v739 = vrot.slane %v248, %v738
        %749 = vset.pattern.permute.xlu0 0
        %750 = vperm.xlu0 %749, %v703
        %v751 = vpop.permute.xlu0 %750
        %754 = vset.pattern.permute.xlu0 0
        %755 = vperm.xlu0 %754, %v704
        %v756 = vpop.permute.xlu0 %755
        %759 = vset.pattern.permute.xlu0 0
        %760 = vperm.xlu0 %759, %v705
        %v761 = vpop.permute.xlu0 %760
        %764 = vset.pattern.permute.xlu0 0
        %765 = vperm.xlu0 %764, %v706
        %v766 = vpop.permute.xlu0 %765
        %v768 = vsub.f32 %v711, %v751
        %v769 = vsub.f32 %v715, %v751
        %v770 = vsub.f32 %v719, %v751
        %v771 = vsub.f32 %v723, %v751
        %v772 = vsub.f32 %v727, %v751
        %v773 = vsub.f32 %v731, %v751
        %v774 = vsub.f32 %v735, %v751
        %v775 = vsub.f32 %v739, %v751
        %v776 = vsub.f32 %v711, %v756
        %v777 = vsub.f32 %v715, %v756
        %v778 = vsub.f32 %v719, %v756
        %v779 = vsub.f32 %v723, %v756
        %v780 = vsub.f32 %v727, %v756
        %v781 = vsub.f32 %v731, %v756
        %v782 = vsub.f32 %v735, %v756
        %v783 = vsub.f32 %v739, %v756
        %v784 = vsub.f32 %v711, %v761
        %v785 = vsub.f32 %v715, %v761
        %v786 = vsub.f32 %v719, %v761
        %v787 = vsub.f32 %v723, %v761
        %v788 = vsub.f32 %v727, %v761
        %v789 = vsub.f32 %v731, %v761
        %v790 = vsub.f32 %v735, %v761
        %v791 = vsub.f32 %v739, %v761
        %v792 = vsub.f32 %v711, %v766
        %v793 = vsub.f32 %v715, %v766
        %v794 = vsub.f32 %v719, %v766
        %v795 = vsub.f32 %v723, %v766
        %v796 = vsub.f32 %v727, %v766
        %v797 = vsub.f32 %v731, %v766
        %v798 = vsub.f32 %v735, %v766
        %v799 = vsub.f32 %v739, %v766
        %v800 = vand.u32 2147483647, %v768
        %v801 = vand.u32 2147483647, %v769
        %v802 = vand.u32 2147483647, %v770
        %v803 = vand.u32 2147483647, %v771
        %v804 = vand.u32 2147483647, %v772
        %v805 = vand.u32 2147483647, %v773
        %v806 = vand.u32 2147483647, %v774
        %v807 = vand.u32 2147483647, %v775
        %v808 = vand.u32 2147483647, %v776
        %v809 = vand.u32 2147483647, %v777
        %v810 = vand.u32 2147483647, %v778
        %v811 = vand.u32 2147483647, %v779
        %v812 = vand.u32 2147483647, %v780
        %v813 = vand.u32 2147483647, %v781
        %v814 = vand.u32 2147483647, %v782
        %v815 = vand.u32 2147483647, %v783
        %v816 = vand.u32 2147483647, %v784
        %v817 = vand.u32 2147483647, %v785
        %v818 = vand.u32 2147483647, %v786
        %v819 = vand.u32 2147483647, %v787
        %v820 = vand.u32 2147483647, %v788
        %v821 = vand.u32 2147483647, %v789
        %v822 = vand.u32 2147483647, %v790
        %v823 = vand.u32 2147483647, %v791
        %v824 = vand.u32 2147483647, %v792
        %v825 = vand.u32 2147483647, %v793
        %v826 = vand.u32 2147483647, %v794
        %v827 = vand.u32 2147483647, %v795
        %v828 = vand.u32 2147483647, %v796
        %v829 = vand.u32 2147483647, %v797
        %v830 = vand.u32 2147483647, %v798
        %v831 = vand.u32 2147483647, %v799
        %v832 = vsub.f32 1.0, %v800
        %v833 = vsub.f32 1.0, %v801
        %v834 = vsub.f32 1.0, %v802
        %v835 = vsub.f32 1.0, %v803
        %v836 = vsub.f32 1.0, %v804
        %v837 = vsub.f32 1.0, %v805
        %v838 = vsub.f32 1.0, %v806
        %v839 = vsub.f32 1.0, %v807
        %v840 = vsub.f32 1.0, %v808
        %v841 = vsub.f32 1.0, %v809
        %v842 = vsub.f32 1.0, %v810
        %v843 = vsub.f32 1.0, %v811
        %v844 = vsub.f32 1.0, %v812
        %v845 = vsub.f32 1.0, %v813
        %v846 = vsub.f32 1.0, %v814
        %v847 = vsub.f32 1.0, %v815
        %v848 = vsub.f32 1.0, %v816
        %v849 = vsub.f32 1.0, %v817
        %v850 = vsub.f32 1.0, %v818
        %v851 = vsub.f32 1.0, %v819
        %v852 = vsub.f32 1.0, %v820
        %v853 = vsub.f32 1.0, %v821
        %v854 = vsub.f32 1.0, %v822
        %v855 = vsub.f32 1.0, %v823
        %v856 = vsub.f32 1.0, %v824
        %v857 = vsub.f32 1.0, %v825
        %v858 = vsub.f32 1.0, %v826
        %v859 = vsub.f32 1.0, %v827
        %v860 = vsub.f32 1.0, %v828
        %v861 = vsub.f32 1.0, %v829
        %v862 = vsub.f32 1.0, %v830
        %v863 = vsub.f32 1.0, %v831
        %v864 = vmax.f32 %v832, 0.0
        %v865 = vmax.f32 %v833, 0.0
        %v866 = vmax.f32 %v834, 0.0
        %v867 = vmax.f32 %v835, 0.0
        %v868 = vmax.f32 %v836, 0.0
        %v869 = vmax.f32 %v837, 0.0
        %v870 = vmax.f32 %v838, 0.0
        %v871 = vmax.f32 %v839, 0.0
        %v872 = vmax.f32 %v840, 0.0
        %v873 = vmax.f32 %v841, 0.0
        %v874 = vmax.f32 %v842, 0.0
        %v875 = vmax.f32 %v843, 0.0
        %v876 = vmax.f32 %v844, 0.0
        %v877 = vmax.f32 %v845, 0.0
        %v878 = vmax.f32 %v846, 0.0
        %v879 = vmax.f32 %v847, 0.0
        %v880 = vmax.f32 %v848, 0.0
        %v881 = vmax.f32 %v849, 0.0
        %v882 = vmax.f32 %v850, 0.0
        %v883 = vmax.f32 %v851, 0.0
        %v884 = vmax.f32 %v852, 0.0
        %v885 = vmax.f32 %v853, 0.0
        %v886 = vmax.f32 %v854, 0.0
        %v887 = vmax.f32 %v855, 0.0
        %v888 = vmax.f32 %v856, 0.0
        %v889 = vmax.f32 %v857, 0.0
        %v890 = vmax.f32 %v858, 0.0
        %v891 = vmax.f32 %v859, 0.0
        %v892 = vmax.f32 %v860, 0.0
        %v893 = vmax.f32 %v861, 0.0
        %v894 = vmax.f32 %v862, 0.0
        %v895 = vmax.f32 %v863, 0.0
        %v896 = vpack.c.bf16 %v872, %v864
        %v897 = vpack.c.bf16 %v873, %v865
        %v898 = vpack.c.bf16 %v874, %v866
        %v899 = vpack.c.bf16 %v875, %v867
        %v900 = vpack.c.bf16 %v876, %v868
        %v901 = vpack.c.bf16 %v877, %v869
        %v902 = vpack.c.bf16 %v878, %v870
        %v903 = vpack.c.bf16 %v879, %v871
        %v904 = vpack.c.bf16 %v888, %v880
        %v905 = vpack.c.bf16 %v889, %v881
        %v906 = vpack.c.bf16 %v890, %v882
        %v907 = vpack.c.bf16 %v891, %v883
        %v908 = vpack.c.bf16 %v892, %v884
        %v909 = vpack.c.bf16 %v893, %v885
        %v910 = vpack.c.bf16 %v894, %v886
        %v911 = vpack.c.bf16 %v895, %v887
        %912 = vst [vmem:[#allocation2 + $0x100] sm:$0xff] %v896
        %913 = vst [vmem:[#allocation2 + $0x108] sm:$0xff] %v897
        %914 = vst [vmem:[#allocation2 + $0x110] sm:$0xff] %v898
        %915 = vst [vmem:[#allocation2 + $0x118] sm:$0xff] %v899
        %916 = vst [vmem:[#allocation2 + $0x120] sm:$0xff] %v900
        %917 = vst [vmem:[#allocation2 + $0x128] sm:$0xff] %v901
        %918 = vst [vmem:[#allocation2 + $0x130] sm:$0xff] %v902
        %919 = vst [vmem:[#allocation2 + $0x138] sm:$0xff] %v903
        %920 = vst [vmem:[#allocation2 + $0x140] sm:$0xff] %v904
        %921 = vst [vmem:[#allocation2 + $0x148] sm:$0xff] %v905
        %922 = vst [vmem:[#allocation2 + $0x150] sm:$0xff] %v906
        %923 = vst [vmem:[#allocation2 + $0x158] sm:$0xff] %v907
        %924 = vst [vmem:[#allocation2 + $0x160] sm:$0xff] %v908
        %925 = vst [vmem:[#allocation2 + $0x168] sm:$0xff] %v909
        %926 = vst [vmem:[#allocation2 + $0x170] sm:$0xff] %v910
        %927 = vst [vmem:[#allocation2 + $0x178] sm:$0xff] %v911
        %v928 = vld [vmem:[%s2 + $0x60] sm:$0xff]
        %v929 = vld [vmem:[%s2 + $0x68] sm:$0xff]
        %v930 = vld [vmem:[%s2 + $0x70] sm:$0xff]
        %v931 = vld [vmem:[%s2 + $0x78] sm:$0xff]
        %v933 = vlaneseq
        %v934 = vshrl.u32 %v933, 7
        %v935 = vsub.s32 0, %v934
        %v936 = vrot.slane %v252, %v935
        %v937 = vlaneseq
        %v938 = vshrl.u32 %v937, 7
        %v939 = vsub.s32 1, %v938
        %v940 = vrot.slane %v252, %v939
        %v941 = vlaneseq
        %v942 = vshrl.u32 %v941, 7
        %v943 = vsub.s32 2, %v942
        %v944 = vrot.slane %v252, %v943
        %v945 = vlaneseq
        %v946 = vshrl.u32 %v945, 7
        %v947 = vsub.s32 3, %v946
        %v948 = vrot.slane %v252, %v947
        %v949 = vlaneseq
        %v950 = vshrl.u32 %v949, 7
        %v951 = vsub.s32 4, %v950
        %v952 = vrot.slane %v252, %v951
        %v953 = vlaneseq
        %v954 = vshrl.u32 %v953, 7
        %v955 = vsub.s32 5, %v954
        %v956 = vrot.slane %v252, %v955
        %v957 = vlaneseq
        %v958 = vshrl.u32 %v957, 7
        %v959 = vsub.s32 6, %v958
        %v960 = vrot.slane %v252, %v959
        %v961 = vlaneseq
        %v962 = vshrl.u32 %v961, 7
        %v963 = vsub.s32 7, %v962
        %v964 = vrot.slane %v252, %v963
        %974 = vset.pattern.permute.xlu0 0
        %975 = vperm.xlu0 %974, %v928
        %v976 = vpop.permute.xlu0 %975
        %979 = vset.pattern.permute.xlu0 0
        %980 = vperm.xlu0 %979, %v929
        %v981 = vpop.permute.xlu0 %980
        %984 = vset.pattern.permute.xlu0 0
        %985 = vperm.xlu0 %984, %v930
        %v986 = vpop.permute.xlu0 %985
        %989 = vset.pattern.permute.xlu0 0
        %990 = vperm.xlu0 %989, %v931
        %v991 = vpop.permute.xlu0 %990
        %v993 = vsub.f32 %v936, %v976
        %v994 = vsub.f32 %v940, %v976
        %v995 = vsub.f32 %v944, %v976
        %v996 = vsub.f32 %v948, %v976
        %v997 = vsub.f32 %v952, %v976
        %v998 = vsub.f32 %v956, %v976
        %v999 = vsub.f32 %v960, %v976
        %v1000 = vsub.f32 %v964, %v976
        %v1001 = vsub.f32 %v936, %v981
        %v1002 = vsub.f32 %v940, %v981
        %v1003 = vsub.f32 %v944, %v981
        %v1004 = vsub.f32 %v948, %v981
        %v1005 = vsub.f32 %v952, %v981
        %v1006 = vsub.f32 %v956, %v981
        %v1007 = vsub.f32 %v960, %v981
        %v1008 = vsub.f32 %v964, %v981
        %v1009 = vsub.f32 %v936, %v986
        %v1010 = vsub.f32 %v940, %v986
        %v1011 = vsub.f32 %v944, %v986
        %v1012 = vsub.f32 %v948, %v986
        %v1013 = vsub.f32 %v952, %v986
        %v1014 = vsub.f32 %v956, %v986
        %v1015 = vsub.f32 %v960, %v986
        %v1016 = vsub.f32 %v964, %v986
        %v1017 = vsub.f32 %v936, %v991
        %v1018 = vsub.f32 %v940, %v991
        %v1019 = vsub.f32 %v944, %v991
        %v1020 = vsub.f32 %v948, %v991
        %v1021 = vsub.f32 %v952, %v991
        %v1022 = vsub.f32 %v956, %v991
        %v1023 = vsub.f32 %v960, %v991
        %v1024 = vsub.f32 %v964, %v991
        %v1025 = vand.u32 2147483647, %v993
        %v1026 = vand.u32 2147483647, %v994
        %v1027 = vand.u32 2147483647, %v995
        %v1028 = vand.u32 2147483647, %v996
        %v1029 = vand.u32 2147483647, %v997
        %v1030 = vand.u32 2147483647, %v998
        %v1031 = vand.u32 2147483647, %v999
        %v1032 = vand.u32 2147483647, %v1000
        %v1033 = vand.u32 2147483647, %v1001
        %v1034 = vand.u32 2147483647, %v1002
        %v1035 = vand.u32 2147483647, %v1003
        %v1036 = vand.u32 2147483647, %v1004
        %v1037 = vand.u32 2147483647, %v1005
        %v1038 = vand.u32 2147483647, %v1006
        %v1039 = vand.u32 2147483647, %v1007
        %v1040 = vand.u32 2147483647, %v1008
        %v1041 = vand.u32 2147483647, %v1009
        %v1042 = vand.u32 2147483647, %v1010
        %v1043 = vand.u32 2147483647, %v1011
        %v1044 = vand.u32 2147483647, %v1012
        %v1045 = vand.u32 2147483647, %v1013
        %v1046 = vand.u32 2147483647, %v1014
        %v1047 = vand.u32 2147483647, %v1015
        %v1048 = vand.u32 2147483647, %v1016
        %v1049 = vand.u32 2147483647, %v1017
        %v1050 = vand.u32 2147483647, %v1018
        %v1051 = vand.u32 2147483647, %v1019
        %v1052 = vand.u32 2147483647, %v1020
        %v1053 = vand.u32 2147483647, %v1021
        %v1054 = vand.u32 2147483647, %v1022
        %v1055 = vand.u32 2147483647, %v1023
        %v1056 = vand.u32 2147483647, %v1024
        %v1057 = vsub.f32 1.0, %v1025
        %v1058 = vsub.f32 1.0, %v1026
        %v1059 = vsub.f32 1.0, %v1027
        %v1060 = vsub.f32 1.0, %v1028
        %v1061 = vsub.f32 1.0, %v1029
        %v1062 = vsub.f32 1.0, %v1030
        %v1063 = vsub.f32 1.0, %v1031
        %v1064 = vsub.f32 1.0, %v1032
        %v1065 = vsub.f32 1.0, %v1033
        %v1066 = vsub.f32 1.0, %v1034
        %v1067 = vsub.f32 1.0, %v1035
        %v1068 = vsub.f32 1.0, %v1036
        %v1069 = vsub.f32 1.0, %v1037
        %v1070 = vsub.f32 1.0, %v1038
        %v1071 = vsub.f32 1.0, %v1039
        %v1072 = vsub.f32 1.0, %v1040
        %v1073 = vsub.f32 1.0, %v1041
        %v1074 = vsub.f32 1.0, %v1042
        %v1075 = vsub.f32 1.0, %v1043
        %v1076 = vsub.f32 1.0, %v1044
        %v1077 = vsub.f32 1.0, %v1045
        %v1078 = vsub.f32 1.0, %v1046
        %v1079 = vsub.f32 1.0, %v1047
        %v1080 = vsub.f32 1.0, %v1048
        %v1081 = vsub.f32 1.0, %v1049
        %v1082 = vsub.f32 1.0, %v1050
        %v1083 = vsub.f32 1.0, %v1051
        %v1084 = vsub.f32 1.0, %v1052
        %v1085 = vsub.f32 1.0, %v1053
        %v1086 = vsub.f32 1.0, %v1054
        %v1087 = vsub.f32 1.0, %v1055
        %v1088 = vsub.f32 1.0, %v1056
        %v1089 = vmax.f32 %v1057, 0.0
        %v1090 = vmax.f32 %v1058, 0.0
        %v1091 = vmax.f32 %v1059, 0.0
        %v1092 = vmax.f32 %v1060, 0.0
        %v1093 = vmax.f32 %v1061, 0.0
        %v1094 = vmax.f32 %v1062, 0.0
        %v1095 = vmax.f32 %v1063, 0.0
        %v1096 = vmax.f32 %v1064, 0.0
        %v1097 = vmax.f32 %v1065, 0.0
        %v1098 = vmax.f32 %v1066, 0.0
        %v1099 = vmax.f32 %v1067, 0.0
        %v1100 = vmax.f32 %v1068, 0.0
        %v1101 = vmax.f32 %v1069, 0.0
        %v1102 = vmax.f32 %v1070, 0.0
        %v1103 = vmax.f32 %v1071, 0.0
        %v1104 = vmax.f32 %v1072, 0.0
        %v1105 = vmax.f32 %v1073, 0.0
        %v1106 = vmax.f32 %v1074, 0.0
        %v1107 = vmax.f32 %v1075, 0.0
        %v1108 = vmax.f32 %v1076, 0.0
        %v1109 = vmax.f32 %v1077, 0.0
        %v1110 = vmax.f32 %v1078, 0.0
        %v1111 = vmax.f32 %v1079, 0.0
        %v1112 = vmax.f32 %v1080, 0.0
        %v1113 = vmax.f32 %v1081, 0.0
        %v1114 = vmax.f32 %v1082, 0.0
        %v1115 = vmax.f32 %v1083, 0.0
        %v1116 = vmax.f32 %v1084, 0.0
        %v1117 = vmax.f32 %v1085, 0.0
        %v1118 = vmax.f32 %v1086, 0.0
        %v1119 = vmax.f32 %v1087, 0.0
        %v1120 = vmax.f32 %v1088, 0.0
        %v1121 = vpack.c.bf16 %v1097, %v1089
        %v1122 = vpack.c.bf16 %v1098, %v1090
        %v1123 = vpack.c.bf16 %v1099, %v1091
        %v1124 = vpack.c.bf16 %v1100, %v1092
        %v1125 = vpack.c.bf16 %v1101, %v1093
        %v1126 = vpack.c.bf16 %v1102, %v1094
        %v1127 = vpack.c.bf16 %v1103, %v1095
        %v1128 = vpack.c.bf16 %v1104, %v1096
        %v1129 = vpack.c.bf16 %v1113, %v1105
        %v1130 = vpack.c.bf16 %v1114, %v1106
        %v1131 = vpack.c.bf16 %v1115, %v1107
        %v1132 = vpack.c.bf16 %v1116, %v1108
        %v1133 = vpack.c.bf16 %v1117, %v1109
        %v1134 = vpack.c.bf16 %v1118, %v1110
        %v1135 = vpack.c.bf16 %v1119, %v1111
        %v1136 = vpack.c.bf16 %v1120, %v1112
        %1137 = vst [vmem:[#allocation2 + $0x180] sm:$0xff] %v1121
        %1138 = vst [vmem:[#allocation2 + $0x188] sm:$0xff] %v1122
        %1139 = vst [vmem:[#allocation2 + $0x190] sm:$0xff] %v1123
        %1140 = vst [vmem:[#allocation2 + $0x198] sm:$0xff] %v1124
        %1141 = vst [vmem:[#allocation2 + $0x1a0] sm:$0xff] %v1125
        %1142 = vst [vmem:[#allocation2 + $0x1a8] sm:$0xff] %v1126
        %1143 = vst [vmem:[#allocation2 + $0x1b0] sm:$0xff] %v1127
        %1144 = vst [vmem:[#allocation2 + $0x1b8] sm:$0xff] %v1128
        %1145 = vst [vmem:[#allocation2 + $0x1c0] sm:$0xff] %v1129
        %1146 = vst [vmem:[#allocation2 + $0x1c8] sm:$0xff] %v1130
        %1147 = vst [vmem:[#allocation2 + $0x1d0] sm:$0xff] %v1131
        %1148 = vst [vmem:[#allocation2 + $0x1d8] sm:$0xff] %v1132
        %1149 = vst [vmem:[#allocation2 + $0x1e0] sm:$0xff] %v1133
        %1150 = vst [vmem:[#allocation2 + $0x1e8] sm:$0xff] %v1134
        %1151 = vst [vmem:[#allocation2 + $0x1f0] sm:$0xff] %v1135
        %1152 = vst [vmem:[#allocation2 + $0x1f8] sm:$0xff] %v1136
        %v1153 = vld [vmem:[#allocation3] sm:$0xf]
        %v1154 = vld [vmem:[#allocation3 + $0x4] sm:$0xf]
        %v1155 = vld [vmem:[#allocation3 + $0x8] sm:$0xf]
        %v1156 = vld [vmem:[#allocation3 + $0xc] sm:$0xf]
        %v1157 = vld [vmem:[#allocation3 + $0x10] sm:$0xf]
        %v1158 = vld [vmem:[#allocation3 + $0x14] sm:$0xf]
        %v1159 = vld [vmem:[#allocation3 + $0x18] sm:$0xf]
        %v1160 = vld [vmem:[#allocation3 + $0x1c] sm:$0xf]
        %v1161 = vld [vmem:[#allocation3 + $0x20] sm:$0xf]
        %v1162 = vld [vmem:[#allocation3 + $0x24] sm:$0xf]
        %v1163 = vld [vmem:[#allocation3 + $0x28] sm:$0xf]
        %v1164 = vld [vmem:[#allocation3 + $0x2c] sm:$0xf]
        %v1165 = vld [vmem:[#allocation3 + $0x30] sm:$0xf]
        %v1166 = vld [vmem:[#allocation3 + $0x34] sm:$0xf]
        %v1167 = vld [vmem:[#allocation3 + $0x38] sm:$0xf]
        %v1168 = vld [vmem:[#allocation3 + $0x3c] sm:$0xf]
        %v1169 = vld [vmem:[#allocation2] sm:$0xff]
        %v1170 = vld [vmem:[#allocation2 + $0x8] sm:$0xff]
        %v1171 = vld [vmem:[#allocation2 + $0x10] sm:$0xff]
        %v1172 = vld [vmem:[#allocation2 + $0x18] sm:$0xff]
        %v1173 = vld [vmem:[#allocation2 + $0x20] sm:$0xff]
        %v1174 = vld [vmem:[#allocation2 + $0x28] sm:$0xff]
        %v1175 = vld [vmem:[#allocation2 + $0x30] sm:$0xff]
        %v1176 = vld [vmem:[#allocation2 + $0x38] sm:$0xff]
        %v1177 = vld [vmem:[#allocation2 + $0x40] sm:$0xff]
        %v1178 = vld [vmem:[#allocation2 + $0x48] sm:$0xff]
        %v1179 = vld [vmem:[#allocation2 + $0x50] sm:$0xff]
        %v1180 = vld [vmem:[#allocation2 + $0x58] sm:$0xff]
        %v1181 = vld [vmem:[#allocation2 + $0x60] sm:$0xff]
        %v1182 = vld [vmem:[#allocation2 + $0x68] sm:$0xff]
        %v1183 = vld [vmem:[#allocation2 + $0x70] sm:$0xff]
        %v1184 = vld [vmem:[#allocation2 + $0x78] sm:$0xff]
        %v1185 = vld [vmem:[#allocation2 + $0x80] sm:$0xff]
        %v1186 = vld [vmem:[#allocation2 + $0x88] sm:$0xff]
        %v1187 = vld [vmem:[#allocation2 + $0x90] sm:$0xff]
        %v1188 = vld [vmem:[#allocation2 + $0x98] sm:$0xff]
        %v1189 = vld [vmem:[#allocation2 + $0xa0] sm:$0xff]
        %v1190 = vld [vmem:[#allocation2 + $0xa8] sm:$0xff]
        %v1191 = vld [vmem:[#allocation2 + $0xb0] sm:$0xff]
        %v1192 = vld [vmem:[#allocation2 + $0xb8] sm:$0xff]
        %v1193 = vld [vmem:[#allocation2 + $0xc0] sm:$0xff]
        %v1194 = vld [vmem:[#allocation2 + $0xc8] sm:$0xff]
        %v1195 = vld [vmem:[#allocation2 + $0xd0] sm:$0xff]
        %v1196 = vld [vmem:[#allocation2 + $0xd8] sm:$0xff]
        %v1197 = vld [vmem:[#allocation2 + $0xe0] sm:$0xff]
        %v1198 = vld [vmem:[#allocation2 + $0xe8] sm:$0xff]
        %v1199 = vld [vmem:[#allocation2 + $0xf0] sm:$0xff]
        %v1200 = vld [vmem:[#allocation2 + $0xf8] sm:$0xff]
        %v1201 = vld [vmem:[#allocation2 + $0x100] sm:$0xff]
        %v1202 = vld [vmem:[#allocation2 + $0x108] sm:$0xff]
        %v1203 = vld [vmem:[#allocation2 + $0x110] sm:$0xff]
        %v1204 = vld [vmem:[#allocation2 + $0x118] sm:$0xff]
        %v1205 = vld [vmem:[#allocation2 + $0x120] sm:$0xff]
        %v1206 = vld [vmem:[#allocation2 + $0x128] sm:$0xff]
        %v1207 = vld [vmem:[#allocation2 + $0x130] sm:$0xff]
        %v1208 = vld [vmem:[#allocation2 + $0x138] sm:$0xff]
        %v1209 = vld [vmem:[#allocation2 + $0x140] sm:$0xff]
        %v1210 = vld [vmem:[#allocation2 + $0x148] sm:$0xff]
        %v1211 = vld [vmem:[#allocation2 + $0x150] sm:$0xff]
        %v1212 = vld [vmem:[#allocation2 + $0x158] sm:$0xff]
        %v1213 = vld [vmem:[#allocation2 + $0x160] sm:$0xff]
        %v1214 = vld [vmem:[#allocation2 + $0x168] sm:$0xff]
        %v1215 = vld [vmem:[#allocation2 + $0x170] sm:$0xff]
        %v1216 = vld [vmem:[#allocation2 + $0x178] sm:$0xff]
        %v1217 = vld [vmem:[#allocation2 + $0x180] sm:$0xff]
        %v1218 = vld [vmem:[#allocation2 + $0x188] sm:$0xff]
        %v1219 = vld [vmem:[#allocation2 + $0x190] sm:$0xff]
        %v1220 = vld [vmem:[#allocation2 + $0x198] sm:$0xff]
        %v1221 = vld [vmem:[#allocation2 + $0x1a0] sm:$0xff]
        %v1222 = vld [vmem:[#allocation2 + $0x1a8] sm:$0xff]
        %v1223 = vld [vmem:[#allocation2 + $0x1b0] sm:$0xff]
        %v1224 = vld [vmem:[#allocation2 + $0x1b8] sm:$0xff]
        %v1225 = vld [vmem:[#allocation2 + $0x1c0] sm:$0xff]
        %v1226 = vld [vmem:[#allocation2 + $0x1c8] sm:$0xff]
        %v1227 = vld [vmem:[#allocation2 + $0x1d0] sm:$0xff]
        %v1228 = vld [vmem:[#allocation2 + $0x1d8] sm:$0xff]
        %v1229 = vld [vmem:[#allocation2 + $0x1e0] sm:$0xff]
        %v1230 = vld [vmem:[#allocation2 + $0x1e8] sm:$0xff]
        %v1231 = vld [vmem:[#allocation2 + $0x1f0] sm:$0xff]
        %v1232 = vld [vmem:[#allocation2 + $0x1f8] sm:$0xff]
        %v1249 = vunpack.c.l.b16 %v1153
        %v1250 = vunpack.c.l.b16 %v1154
        %v1251 = vunpack.c.l.b16 %v1155
        %v1252 = vunpack.c.l.b16 %v1156
        %v1253 = vunpack.c.l.b16 %v1157
        %v1254 = vunpack.c.l.b16 %v1158
        %v1255 = vunpack.c.l.b16 %v1159
        %v1256 = vunpack.c.l.b16 %v1160
        %v1257 = vunpack.c.l.b16 %v1161
        %v1258 = vunpack.c.l.b16 %v1162
        %v1259 = vunpack.c.l.b16 %v1163
        %v1260 = vunpack.c.l.b16 %v1164
        %v1261 = vunpack.c.l.b16 %v1165
        %v1262 = vunpack.c.l.b16 %v1166
        %v1263 = vunpack.c.l.b16 %v1167
        %v1264 = vunpack.c.l.b16 %v1168
        %v1265 = vpack.c.b16 %v1250, %v1249
        %v1266 = vpack.c.b16 %v1252, %v1251
        %v1267 = vpack.c.b16 %v1254, %v1253
        %v1268 = vpack.c.b16 %v1256, %v1255
        %v1269 = vpack.c.b16 %v1258, %v1257
        %v1270 = vpack.c.b16 %v1260, %v1259
        %v1271 = vpack.c.b16 %v1262, %v1261
        %v1272 = vpack.c.b16 %v1264, %v1263
        %1281 = vmatprep.subr.bf16.mxu0 %v1170
        %1282 = vmatpush1.bf16.msra.mxu0 %v1169
        %1283 = vmatprep.subr.bf16.mxu0 %v1178
        %1284 = vmatpush1.bf16.msra.mxu0 %v1177
        %1285 = vmatprep.subr.bf16.mxu0 %v1186
        %1286 = vmatpush1.bf16.msra.mxu0 %v1185
        %1287 = vmatprep.subr.bf16.mxu0 %v1194
        %1288 = vmatpush1.bf16.msra.mxu0 %v1193
        %1289 = vmatprep.subr.bf16.mxu0 %v1202
        %1290 = vmatpush1.bf16.msra.mxu0 %v1201
        %1291 = vmatprep.subr.bf16.mxu0 %v1210
        %1292 = vmatpush1.bf16.msra.mxu0 %v1209
        %1293 = vmatprep.subr.bf16.mxu0 %v1218
        %1294 = vmatpush1.bf16.msra.mxu0 %v1217
        %1295 = vmatprep.subr.bf16.mxu0 %v1226
        %1296 = vmatpush1.bf16.msra.mxu0 %v1225
        %1297 = vmatprep.subr.bf16.mxu0 0
        %1298 = vmatpush1.bf16.msra.mxu0 0
        %1299 = vmatprep.subr.bf16.mxu0 0
        %1300 = vmatpush1.bf16.msra.mxu0 0
        %1301 = vmatprep.subr.bf16.mxu0 0
        %1302 = vmatpush1.bf16.msra.mxu0 0
        %1303 = vmatprep.subr.bf16.mxu0 0
        %1304 = vmatpush1.bf16.msra.mxu0 0
        %1305 = vmatprep.subr.bf16.mxu0 0
        %1306 = vmatpush1.bf16.msra.mxu0 0
        %1307 = vmatprep.subr.bf16.mxu0 0
        %1308 = vmatpush1.bf16.msra.mxu0 0
        %1309 = vmatprep.subr.bf16.mxu0 0
        %1310 = vmatpush1.bf16.msra.mxu0 0
        %1311 = vmatprep.subr.bf16.mxu0 0
        %1312 = vmatpush1.bf16.msra.mxu0 0
        %1313 = vmatprep.mubr.bf16.mxu0 0
        %1314 = vmatmul.mubr.bf16.gmra.mrb[0].mxu0 %v1265
        %v1315 = vpop.f32.mrb[0].mxu0
        %v1316 = vadd.f32 0.0, %v1315
        %v1317 = vpop.f32.mrb[0].mxu0
        %v1318 = vadd.f32 0.0, %v1317
        %v1319 = vpop.f32.mrb[0].mxu0
        %v1320 = vadd.f32 0.0, %v1319
        %v1321 = vpop.f32.mrb[0].mxu0
        %v1322 = vadd.f32 0.0, %v1321
        %1323 = vmatprep.mubr.bf16.mxu0 0
        %1324 = vmatmul.mubr.bf16.gmra.mrb[0].mxu0 %v1266
        %v1325 = vpop.f32.mrb[0].mxu0
        %v1326 = vadd.f32 0.0, %v1325
        %v1327 = vpop.f32.mrb[0].mxu0
        %v1328 = vadd.f32 0.0, %v1327
        %v1329 = vpop.f32.mrb[0].mxu0
        %v1330 = vadd.f32 0.0, %v1329
        %v1331 = vpop.f32.mrb[0].mxu0
        %v1332 = vadd.f32 0.0, %v1331
        %1333 = vmatprep.mubr.bf16.mxu0 0
        %1334 = vmatmul.mubr.bf16.gmra.mrb[0].mxu0 %v1267
        %v1335 = vpop.f32.mrb[0].mxu0
        %v1336 = vadd.f32 0.0, %v1335
        %v1337 = vpop.f32.mrb[0].mxu0
        %v1338 = vadd.f32 0.0, %v1337
        %v1339 = vpop.f32.mrb[0].mxu0
        %v1340 = vadd.f32 0.0, %v1339
        %v1341 = vpop.f32.mrb[0].mxu0
        %v1342 = vadd.f32 0.0, %v1341
        %1343 = vmatprep.mubr.bf16.mxu0 0
        %1344 = vmatmul.mubr.bf16.gmra.mrb[0].mxu0 %v1268
        %v1345 = vpop.f32.mrb[0].mxu0
        %v1346 = vadd.f32 0.0, %v1345
        %v1347 = vpop.f32.mrb[0].mxu0
        %v1348 = vadd.f32 0.0, %v1347
        %v1349 = vpop.f32.mrb[0].mxu0
        %v1350 = vadd.f32 0.0, %v1349
        %v1351 = vpop.f32.mrb[0].mxu0
        %v1352 = vadd.f32 0.0, %v1351
        %1353 = vmatprep.mubr.bf16.mxu0 0
        %1354 = vmatmul.mubr.bf16.gmra.mrb[0].mxu0 %v1269
        %v1355 = vpop.f32.mrb[0].mxu0
        %v1356 = vadd.f32 0.0, %v1355
        %v1357 = vpop.f32.mrb[0].mxu0
        %v1358 = vadd.f32 0.0, %v1357
        %v1359 = vpop.f32.mrb[0].mxu0
        %v1360 = vadd.f32 0.0, %v1359
        %v1361 = vpop.f32.mrb[0].mxu0
        %v1362 = vadd.f32 0.0, %v1361
        %1363 = vmatprep.mubr.bf16.mxu0 0
        %1364 = vmatmul.mubr.bf16.gmra.mrb[0].mxu0 %v1270
        %v1365 = vpop.f32.mrb[0].mxu0
        %v1366 = vadd.f32 0.0, %v1365
        %v1367 = vpop.f32.mrb[0].mxu0
        %v1368 = vadd.f32 0.0, %v1367
        %v1369 = vpop.f32.mrb[0].mxu0
        %v1370 = vadd.f32 0.0, %v1369
        %v1371 = vpop.f32.mrb[0].mxu0
        %v1372 = vadd.f32 0.0, %v1371
        %1373 = vmatprep.mubr.bf16.mxu0 0
        %1374 = vmatmul.mubr.bf16.gmra.mrb[0].mxu0 %v1271
        %v1375 = vpop.f32.mrb[0].mxu0
        %v1376 = vadd.f32 0.0, %v1375
        %v1377 = vpop.f32.mrb[0].mxu0
        %v1378 = vadd.f32 0.0, %v1377
        %v1379 = vpop.f32.mrb[0].mxu0
        %v1380 = vadd.f32 0.0, %v1379
        %v1381 = vpop.f32.mrb[0].mxu0
        %v1382 = vadd.f32 0.0, %v1381
        %1383 = vmatprep.mubr.bf16.mxu0 0
        %1384 = vmatmul.mubr.bf16.gmra.mrb[0].mxu0 %v1272
        %v1385 = vpop.f32.mrb[0].mxu0
        %v1386 = vadd.f32 0.0, %v1385
        %v1387 = vpop.f32.mrb[0].mxu0
        %v1388 = vadd.f32 0.0, %v1387
        %v1389 = vpop.f32.mrb[0].mxu0
        %v1390 = vadd.f32 0.0, %v1389
        %v1391 = vpop.f32.mrb[0].mxu0
        %v1392 = vadd.f32 0.0, %v1391
        %1393 = vdwg.mxu0
        %1394 = vmatprep.subr.bf16.mxu0 %v1172
        %1395 = vmatpush1.bf16.msra.mxu0 %v1171
        %1396 = vmatprep.subr.bf16.mxu0 %v1180
        %1397 = vmatpush1.bf16.msra.mxu0 %v1179
        %1398 = vmatprep.subr.bf16.mxu0 %v1188
        %1399 = vmatpush1.bf16.msra.mxu0 %v1187
        %1400 = vmatprep.subr.bf16.mxu0 %v1196
        %1401 = vmatpush1.bf16.msra.mxu0 %v1195
        %1402 = vmatprep.subr.bf16.mxu0 %v1204
        %1403 = vmatpush1.bf16.msra.mxu0 %v1203
        %1404 = vmatprep.subr.bf16.mxu0 %v1212
        %1405 = vmatpush1.bf16.msra.mxu0 %v1211
        %1406 = vmatprep.subr.bf16.mxu0 %v1220
        %1407 = vmatpush1.bf16.msra.mxu0 %v1219
        %1408 = vmatprep.subr.bf16.mxu0 %v1228
        %1409 = vmatpush1.bf16.msra.mxu0 %v1227
        %1410 = vmatprep.subr.bf16.mxu0 0
        %1411 = vmatpush1.bf16.msra.mxu0 0
        %1412 = vmatprep.subr.bf16.mxu0 0
        %1413 = vmatpush1.bf16.msra.mxu0 0
        %1414 = vmatprep.subr.bf16.mxu0 0
        %1415 = vmatpush1.bf16.msra.mxu0 0
        %1416 = vmatprep.subr.bf16.mxu0 0
        %1417 = vmatpush1.bf16.msra.mxu0 0
        %1418 = vmatprep.subr.bf16.mxu0 0
        %1419 = vmatpush1.bf16.msra.mxu0 0
        %1420 = vmatprep.subr.bf16.mxu0 0
        %1421 = vmatpush1.bf16.msra.mxu0 0
        %1422 = vmatprep.subr.bf16.mxu0 0
        %1423 = vmatpush1.bf16.msra.mxu0 0
        %1424 = vmatprep.subr.bf16.mxu0 0
        %1425 = vmatpush1.bf16.msra.mxu0 0
        %1426 = vmatprep.mubr.bf16.mxu0 0
        %1427 = vmatmul.mubr.bf16.gmra.mrb[0].mxu0 %v1265
        %v1428 = vpop.f32.mrb[0].mxu0
        %v1429 = vadd.f32 0.0, %v1428
        %v1430 = vpop.f32.mrb[0].mxu0
        %v1431 = vadd.f32 0.0, %v1430
        %v1432 = vpop.f32.mrb[0].mxu0
        %v1433 = vadd.f32 0.0, %v1432
        %v1434 = vpop.f32.mrb[0].mxu0
        %v1435 = vadd.f32 0.0, %v1434
        %1436 = vmatprep.mubr.bf16.mxu0 0
        %1437 = vmatmul.mubr.bf16.gmra.mrb[0].mxu0 %v1266
        %v1438 = vpop.f32.mrb[0].mxu0
        %v1439 = vadd.f32 0.0, %v1438
        %v1440 = vpop.f32.mrb[0].mxu0
        %v1441 = vadd.f32 0.0, %v1440
        %v1442 = vpop.f32.mrb[0].mxu0
        %v1443 = vadd.f32 0.0, %v1442
        %v1444 = vpop.f32.mrb[0].mxu0
        %v1445 = vadd.f32 0.0, %v1444
        %1446 = vmatprep.mubr.bf16.mxu0 0
        %1447 = vmatmul.mubr.bf16.gmra.mrb[0].mxu0 %v1267
        %v1448 = vpop.f32.mrb[0].mxu0
        %v1449 = vadd.f32 0.0, %v1448
        %v1450 = vpop.f32.mrb[0].mxu0
        %v1451 = vadd.f32 0.0, %v1450
        %v1452 = vpop.f32.mrb[0].mxu0
        %v1453 = vadd.f32 0.0, %v1452
        %v1454 = vpop.f32.mrb[0].mxu0
        %v1455 = vadd.f32 0.0, %v1454
        %1456 = vmatprep.mubr.bf16.mxu0 0
        %1457 = vmatmul.mubr.bf16.gmra.mrb[0].mxu0 %v1268
        %v1458 = vpop.f32.mrb[0].mxu0
        %v1459 = vadd.f32 0.0, %v1458
        %v1460 = vpop.f32.mrb[0].mxu0
        %v1461 = vadd.f32 0.0, %v1460
        %v1462 = vpop.f32.mrb[0].mxu0
        %v1463 = vadd.f32 0.0, %v1462
        %v1464 = vpop.f32.mrb[0].mxu0
        %v1465 = vadd.f32 0.0, %v1464
        %1466 = vmatprep.mubr.bf16.mxu0 0
        %1467 = vmatmul.mubr.bf16.gmra.mrb[0].mxu0 %v1269
        %v1468 = vpop.f32.mrb[0].mxu0
        %v1469 = vadd.f32 0.0, %v1468
        %v1470 = vpop.f32.mrb[0].mxu0
        %v1471 = vadd.f32 0.0, %v1470
        %v1472 = vpop.f32.mrb[0].mxu0
        %v1473 = vadd.f32 0.0, %v1472
        %v1474 = vpop.f32.mrb[0].mxu0
        %v1475 = vadd.f32 0.0, %v1474
        %1476 = vmatprep.mubr.bf16.mxu0 0
        %1477 = vmatmul.mubr.bf16.gmra.mrb[0].mxu0 %v1270
        %v1478 = vpop.f32.mrb[0].mxu0
        %v1479 = vadd.f32 0.0, %v1478
        %v1480 = vpop.f32.mrb[0].mxu0
        %v1481 = vadd.f32 0.0, %v1480
        %v1482 = vpop.f32.mrb[0].mxu0
        %v1483 = vadd.f32 0.0, %v1482
        %v1484 = vpop.f32.mrb[0].mxu0
        %v1485 = vadd.f32 0.0, %v1484
        %1486 = vmatprep.mubr.bf16.mxu0 0
        %1487 = vmatmul.mubr.bf16.gmra.mrb[0].mxu0 %v1271
        %v1488 = vpop.f32.mrb[0].mxu0
        %v1489 = vadd.f32 0.0, %v1488
        %v1490 = vpop.f32.mrb[0].mxu0
        %v1491 = vadd.f32 0.0, %v1490
        %v1492 = vpop.f32.mrb[0].mxu0
        %v1493 = vadd.f32 0.0, %v1492
        %v1494 = vpop.f32.mrb[0].mxu0
        %v1495 = vadd.f32 0.0, %v1494
        %1496 = vmatprep.mubr.bf16.mxu0 0
        %1497 = vmatmul.mubr.bf16.gmra.mrb[0].mxu0 %v1272
        %v1498 = vpop.f32.mrb[0].mxu0
        %v1499 = vadd.f32 0.0, %v1498
        %v1500 = vpop.f32.mrb[0].mxu0
        %v1501 = vadd.f32 0.0, %v1500
        %v1502 = vpop.f32.mrb[0].mxu0
        %v1503 = vadd.f32 0.0, %v1502
        %v1504 = vpop.f32.mrb[0].mxu0
        %v1505 = vadd.f32 0.0, %v1504
        %1506 = vdwg.mxu0
        %1507 = vmatprep.subr.bf16.mxu0 %v1174
        %1508 = vmatpush1.bf16.msra.mxu0 %v1173
        %1509 = vmatprep.subr.bf16.mxu0 %v1182
        %1510 = vmatpush1.bf16.msra.mxu0 %v1181
        %1511 = vmatprep.subr.bf16.mxu0 %v1190
        %1512 = vmatpush1.bf16.msra.mxu0 %v1189
        %1513 = vmatprep.subr.bf16.mxu0 %v1198
        %1514 = vmatpush1.bf16.msra.mxu0 %v1197
        %1515 = vmatprep.subr.bf16.mxu0 %v1206
        %1516 = vmatpush1.bf16.msra.mxu0 %v1205
        %1517 = vmatprep.subr.bf16.mxu0 %v1214
        %1518 = vmatpush1.bf16.msra.mxu0 %v1213
        %1519 = vmatprep.subr.bf16.mxu0 %v1222
        %1520 = vmatpush1.bf16.msra.mxu0 %v1221
        %1521 = vmatprep.subr.bf16.mxu0 %v1230
        %1522 = vmatpush1.bf16.msra.mxu0 %v1229
        %1523 = vmatprep.subr.bf16.mxu0 0
        %1524 = vmatpush1.bf16.msra.mxu0 0
        %1525 = vmatprep.subr.bf16.mxu0 0
        %1526 = vmatpush1.bf16.msra.mxu0 0
        %1527 = vmatprep.subr.bf16.mxu0 0
        %1528 = vmatpush1.bf16.msra.mxu0 0
        %1529 = vmatprep.subr.bf16.mxu0 0
        %1530 = vmatpush1.bf16.msra.mxu0 0
        %1531 = vmatprep.subr.bf16.mxu0 0
        %1532 = vmatpush1.bf16.msra.mxu0 0
        %1533 = vmatprep.subr.bf16.mxu0 0
        %1534 = vmatpush1.bf16.msra.mxu0 0
        %1535 = vmatprep.subr.bf16.mxu0 0
        %1536 = vmatpush1.bf16.msra.mxu0 0
        %1537 = vmatprep.subr.bf16.mxu0 0
        %1538 = vmatpush1.bf16.msra.mxu0 0
        %1539 = vmatprep.mubr.bf16.mxu0 0
        %1540 = vmatmul.mubr.bf16.gmra.mrb[0].mxu0 %v1265
        %v1541 = vpop.f32.mrb[0].mxu0
        %v1542 = vadd.f32 0.0, %v1541
        %v1543 = vpop.f32.mrb[0].mxu0
        %v1544 = vadd.f32 0.0, %v1543
        %v1545 = vpop.f32.mrb[0].mxu0
        %v1546 = vadd.f32 0.0, %v1545
        %v1547 = vpop.f32.mrb[0].mxu0
        %v1548 = vadd.f32 0.0, %v1547
        %1549 = vmatprep.mubr.bf16.mxu0 0
        %1550 = vmatmul.mubr.bf16.gmra.mrb[0].mxu0 %v1266
        %v1551 = vpop.f32.mrb[0].mxu0
        %v1552 = vadd.f32 0.0, %v1551
        %v1553 = vpop.f32.mrb[0].mxu0
        %v1554 = vadd.f32 0.0, %v1553
        %v1555 = vpop.f32.mrb[0].mxu0
        %v1556 = vadd.f32 0.0, %v1555
        %v1557 = vpop.f32.mrb[0].mxu0
        %v1558 = vadd.f32 0.0, %v1557
        %1559 = vmatprep.mubr.bf16.mxu0 0
        %1560 = vmatmul.mubr.bf16.gmra.mrb[0].mxu0 %v1267
        %v1561 = vpop.f32.mrb[0].mxu0
        %v1562 = vadd.f32 0.0, %v1561
        %v1563 = vpop.f32.mrb[0].mxu0
        %v1564 = vadd.f32 0.0, %v1563
        %v1565 = vpop.f32.mrb[0].mxu0
        %v1566 = vadd.f32 0.0, %v1565
        %v1567 = vpop.f32.mrb[0].mxu0
        %v1568 = vadd.f32 0.0, %v1567
        %1569 = vmatprep.mubr.bf16.mxu0 0
        %1570 = vmatmul.mubr.bf16.gmra.mrb[0].mxu0 %v1268
        %v1571 = vpop.f32.mrb[0].mxu0
        %v1572 = vadd.f32 0.0, %v1571
        %v1573 = vpop.f32.mrb[0].mxu0
        %v1574 = vadd.f32 0.0, %v1573
        %v1575 = vpop.f32.mrb[0].mxu0
        %v1576 = vadd.f32 0.0, %v1575
        %v1577 = vpop.f32.mrb[0].mxu0
        %v1578 = vadd.f32 0.0, %v1577
        %1579 = vmatprep.mubr.bf16.mxu0 0
        %1580 = vmatmul.mubr.bf16.gmra.mrb[0].mxu0 %v1269
        %v1581 = vpop.f32.mrb[0].mxu0
        %v1582 = vadd.f32 0.0, %v1581
        %v1583 = vpop.f32.mrb[0].mxu0
        %v1584 = vadd.f32 0.0, %v1583
        %v1585 = vpop.f32.mrb[0].mxu0
        %v1586 = vadd.f32 0.0, %v1585
        %v1587 = vpop.f32.mrb[0].mxu0
        %v1588 = vadd.f32 0.0, %v1587
        %1589 = vmatprep.mubr.bf16.mxu0 0
        %1590 = vmatmul.mubr.bf16.gmra.mrb[0].mxu0 %v1270
        %v1591 = vpop.f32.mrb[0].mxu0
        %v1592 = vadd.f32 0.0, %v1591
        %v1593 = vpop.f32.mrb[0].mxu0
        %v1594 = vadd.f32 0.0, %v1593
        %v1595 = vpop.f32.mrb[0].mxu0
        %v1596 = vadd.f32 0.0, %v1595
        %v1597 = vpop.f32.mrb[0].mxu0
        %v1598 = vadd.f32 0.0, %v1597
        %1599 = vmatprep.mubr.bf16.mxu0 0
        %1600 = vmatmul.mubr.bf16.gmra.mrb[0].mxu0 %v1271
        %v1601 = vpop.f32.mrb[0].mxu0
        %v1602 = vadd.f32 0.0, %v1601
        %v1603 = vpop.f32.mrb[0].mxu0
        %v1604 = vadd.f32 0.0, %v1603
        %v1605 = vpop.f32.mrb[0].mxu0
        %v1606 = vadd.f32 0.0, %v1605
        %v1607 = vpop.f32.mrb[0].mxu0
        %v1608 = vadd.f32 0.0, %v1607
        %1609 = vmatprep.mubr.bf16.mxu0 0
        %1610 = vmatmul.mubr.bf16.gmra.mrb[0].mxu0 %v1272
        %v1611 = vpop.f32.mrb[0].mxu0
        %v1612 = vadd.f32 0.0, %v1611
        %v1613 = vpop.f32.mrb[0].mxu0
        %v1614 = vadd.f32 0.0, %v1613
        %v1615 = vpop.f32.mrb[0].mxu0
        %v1616 = vadd.f32 0.0, %v1615
        %v1617 = vpop.f32.mrb[0].mxu0
        %v1618 = vadd.f32 0.0, %v1617
        %1619 = vdwg.mxu0
        %1620 = vmatprep.subr.bf16.mxu0 %v1176
        %1621 = vmatpush1.bf16.msra.mxu0 %v1175
        %1622 = vmatprep.subr.bf16.mxu0 %v1184
        %1623 = vmatpush1.bf16.msra.mxu0 %v1183
        %1624 = vmatprep.subr.bf16.mxu0 %v1192
        %1625 = vmatpush1.bf16.msra.mxu0 %v1191
        %1626 = vmatprep.subr.bf16.mxu0 %v1200
        %1627 = vmatpush1.bf16.msra.mxu0 %v1199
        %1628 = vmatprep.subr.bf16.mxu0 %v1208
        %1629 = vmatpush1.bf16.msra.mxu0 %v1207
        %1630 = vmatprep.subr.bf16.mxu0 %v1216
        %1631 = vmatpush1.bf16.msra.mxu0 %v1215
        %1632 = vmatprep.subr.bf16.mxu0 %v1224
        %1633 = vmatpush1.bf16.msra.mxu0 %v1223
        %1634 = vmatprep.subr.bf16.mxu0 %v1232
        %1635 = vmatpush1.bf16.msra.mxu0 %v1231
        %1636 = vmatprep.subr.bf16.mxu0 0
        %1637 = vmatpush1.bf16.msra.mxu0 0
        %1638 = vmatprep.subr.bf16.mxu0 0
        %1639 = vmatpush1.bf16.msra.mxu0 0
        %1640 = vmatprep.subr.bf16.mxu0 0
        %1641 = vmatpush1.bf16.msra.mxu0 0
        %1642 = vmatprep.subr.bf16.mxu0 0
        %1643 = vmatpush1.bf16.msra.mxu0 0
        %1644 = vmatprep.subr.bf16.mxu0 0
        %1645 = vmatpush1.bf16.msra.mxu0 0
        %1646 = vmatprep.subr.bf16.mxu0 0
        %1647 = vmatpush1.bf16.msra.mxu0 0
        %1648 = vmatprep.subr.bf16.mxu0 0
        %1649 = vmatpush1.bf16.msra.mxu0 0
        %1650 = vmatprep.subr.bf16.mxu0 0
        %1651 = vmatpush1.bf16.msra.mxu0 0
        %1652 = vmatprep.mubr.bf16.mxu0 0
        %1653 = vmatmul.mubr.bf16.gmra.mrb[0].mxu0 %v1265
        %v1654 = vpop.f32.mrb[0].mxu0
        %v1655 = vadd.f32 0.0, %v1654
        %v1656 = vpop.f32.mrb[0].mxu0
        %v1657 = vadd.f32 0.0, %v1656
        %v1658 = vpop.f32.mrb[0].mxu0
        %v1659 = vadd.f32 0.0, %v1658
        %v1660 = vpop.f32.mrb[0].mxu0
        %v1661 = vadd.f32 0.0, %v1660
        %1662 = vmatprep.mubr.bf16.mxu0 0
        %1663 = vmatmul.mubr.bf16.gmra.mrb[0].mxu0 %v1266
        %v1664 = vpop.f32.mrb[0].mxu0
        %v1665 = vadd.f32 0.0, %v1664
        %v1666 = vpop.f32.mrb[0].mxu0
        %v1667 = vadd.f32 0.0, %v1666
        %v1668 = vpop.f32.mrb[0].mxu0
        %v1669 = vadd.f32 0.0, %v1668
        %v1670 = vpop.f32.mrb[0].mxu0
        %v1671 = vadd.f32 0.0, %v1670
        %1672 = vmatprep.mubr.bf16.mxu0 0
        %1673 = vmatmul.mubr.bf16.gmra.mrb[0].mxu0 %v1267
        %v1674 = vpop.f32.mrb[0].mxu0
        %v1675 = vadd.f32 0.0, %v1674
        %v1676 = vpop.f32.mrb[0].mxu0
        %v1677 = vadd.f32 0.0, %v1676
        %v1678 = vpop.f32.mrb[0].mxu0
        %v1679 = vadd.f32 0.0, %v1678
        %v1680 = vpop.f32.mrb[0].mxu0
        %v1681 = vadd.f32 0.0, %v1680
        %1682 = vmatprep.mubr.bf16.mxu0 0
        %1683 = vmatmul.mubr.bf16.gmra.mrb[0].mxu0 %v1268
        %v1684 = vpop.f32.mrb[0].mxu0
        %v1685 = vadd.f32 0.0, %v1684
        %v1686 = vpop.f32.mrb[0].mxu0
        %v1687 = vadd.f32 0.0, %v1686
        %v1688 = vpop.f32.mrb[0].mxu0
        %v1689 = vadd.f32 0.0, %v1688
        %v1690 = vpop.f32.mrb[0].mxu0
        %v1691 = vadd.f32 0.0, %v1690
        %1692 = vmatprep.mubr.bf16.mxu0 0
        %1693 = vmatmul.mubr.bf16.gmra.mrb[0].mxu0 %v1269
        %v1694 = vpop.f32.mrb[0].mxu0
        %v1695 = vadd.f32 0.0, %v1694
        %v1696 = vpop.f32.mrb[0].mxu0
        %v1697 = vadd.f32 0.0, %v1696
        %v1698 = vpop.f32.mrb[0].mxu0
        %v1699 = vadd.f32 0.0, %v1698
        %v1700 = vpop.f32.mrb[0].mxu0
        %v1701 = vadd.f32 0.0, %v1700
        %1702 = vmatprep.mubr.bf16.mxu0 0
        %1703 = vmatmul.mubr.bf16.gmra.mrb[0].mxu0 %v1270
        %v1704 = vpop.f32.mrb[0].mxu0
        %v1705 = vadd.f32 0.0, %v1704
        %v1706 = vpop.f32.mrb[0].mxu0
        %v1707 = vadd.f32 0.0, %v1706
        %v1708 = vpop.f32.mrb[0].mxu0
        %v1709 = vadd.f32 0.0, %v1708
        %v1710 = vpop.f32.mrb[0].mxu0
        %v1711 = vadd.f32 0.0, %v1710
        %1712 = vmatprep.mubr.bf16.mxu0 0
        %1713 = vmatmul.mubr.bf16.gmra.mrb[0].mxu0 %v1271
        %v1714 = vpop.f32.mrb[0].mxu0
        %v1715 = vadd.f32 0.0, %v1714
        %v1716 = vpop.f32.mrb[0].mxu0
        %v1717 = vadd.f32 0.0, %v1716
        %v1718 = vpop.f32.mrb[0].mxu0
        %v1719 = vadd.f32 0.0, %v1718
        %v1720 = vpop.f32.mrb[0].mxu0
        %v1721 = vadd.f32 0.0, %v1720
        %1722 = vmatprep.mubr.bf16.mxu0 0
        %1723 = vmatmul.mubr.bf16.gmra.mrb[0].mxu0 %v1272
        %v1724 = vpop.f32.mrb[0].mxu0
        %v1725 = vadd.f32 0.0, %v1724
        %v1726 = vpop.f32.mrb[0].mxu0
        %v1727 = vadd.f32 0.0, %v1726
        %v1728 = vpop.f32.mrb[0].mxu0
        %v1729 = vadd.f32 0.0, %v1728
        %v1730 = vpop.f32.mrb[0].mxu0
        %v1731 = vadd.f32 0.0, %v1730
        %1732 = vdwg.mxu0
        %v1733 = vmul.f32 %v1316, %v1336
        %v1734 = vmul.f32 %v1318, %v1338
        %v1735 = vmul.f32 %v1429, %v1449
        %v1736 = vmul.f32 %v1431, %v1451
        %v1737 = vmul.f32 %v1542, %v1562
        %v1738 = vmul.f32 %v1544, %v1564
        %v1739 = vmul.f32 %v1655, %v1675
        %v1740 = vmul.f32 %v1657, %v1677
        %v1741 = vmul.f32 %v1320, %v1340
        %v1742 = vmul.f32 %v1322, %v1342
        %v1743 = vmul.f32 %v1433, %v1453
        %v1744 = vmul.f32 %v1435, %v1455
        %v1745 = vmul.f32 %v1546, %v1566
        %v1746 = vmul.f32 %v1548, %v1568
        %v1747 = vmul.f32 %v1659, %v1679
        %v1748 = vmul.f32 %v1661, %v1681
        %v1749 = vmul.f32 %v1326, %v1346
        %v1750 = vmul.f32 %v1328, %v1348
        %v1751 = vmul.f32 %v1439, %v1459
        %v1752 = vmul.f32 %v1441, %v1461
        %v1753 = vmul.f32 %v1552, %v1572
        %v1754 = vmul.f32 %v1554, %v1574
        %v1755 = vmul.f32 %v1665, %v1685
        %v1756 = vmul.f32 %v1667, %v1687
        %v1757 = vmul.f32 %v1330, %v1350
        %v1758 = vmul.f32 %v1332, %v1352
        %v1759 = vmul.f32 %v1443, %v1463
        %v1760 = vmul.f32 %v1445, %v1465
        %v1761 = vmul.f32 %v1556, %v1576
        %v1762 = vmul.f32 %v1558, %v1578
        %v1763 = vmul.f32 %v1669, %v1689
        %v1764 = vmul.f32 %v1671, %v1691
        %v1765 = vmul.f32 %v1733, %v1356
        %v1766 = vmul.f32 %v1734, %v1358
        %v1767 = vmul.f32 %v1735, %v1469
        %v1768 = vmul.f32 %v1736, %v1471
        %v1769 = vmul.f32 %v1737, %v1582
        %v1770 = vmul.f32 %v1738, %v1584
        %v1771 = vmul.f32 %v1739, %v1695
        %v1772 = vmul.f32 %v1740, %v1697
        %v1773 = vmul.f32 %v1741, %v1360
        %v1774 = vmul.f32 %v1742, %v1362
        %v1775 = vmul.f32 %v1743, %v1473
        %v1776 = vmul.f32 %v1744, %v1475
        %v1777 = vmul.f32 %v1745, %v1586
        %v1778 = vmul.f32 %v1746, %v1588
        %v1779 = vmul.f32 %v1747, %v1699
        %v1780 = vmul.f32 %v1748, %v1701
        %v1781 = vmul.f32 %v1749, %v1366
        %v1782 = vmul.f32 %v1750, %v1368
        %v1783 = vmul.f32 %v1751, %v1479
        %v1784 = vmul.f32 %v1752, %v1481
        %v1785 = vmul.f32 %v1753, %v1592
        %v1786 = vmul.f32 %v1754, %v1594
        %v1787 = vmul.f32 %v1755, %v1705
        %v1788 = vmul.f32 %v1756, %v1707
        %v1789 = vmul.f32 %v1757, %v1370
        %v1790 = vmul.f32 %v1758, %v1372
        %v1791 = vmul.f32 %v1759, %v1483
        %v1792 = vmul.f32 %v1760, %v1485
        %v1793 = vmul.f32 %v1761, %v1596
        %v1794 = vmul.f32 %v1762, %v1598
        %v1795 = vmul.f32 %v1763, %v1709
        %v1796 = vmul.f32 %v1764, %v1711
        %v1797 = vmul.f32 %v1765, %v1376
        %v1798 = vmul.f32 %v1766, %v1378
        %v1799 = vmul.f32 %v1767, %v1489
        %v1800 = vmul.f32 %v1768, %v1491
        %v1801 = vmul.f32 %v1769, %v1602
        %v1802 = vmul.f32 %v1770, %v1604
        %v1803 = vmul.f32 %v1771, %v1715
        %v1804 = vmul.f32 %v1772, %v1717
        %v1805 = vmul.f32 %v1773, %v1380
        %v1806 = vmul.f32 %v1774, %v1382
        %v1807 = vmul.f32 %v1775, %v1493
        %v1808 = vmul.f32 %v1776, %v1495
        %v1809 = vmul.f32 %v1777, %v1606
        %v1810 = vmul.f32 %v1778, %v1608
        %v1811 = vmul.f32 %v1779, %v1719
        %v1812 = vmul.f32 %v1780, %v1721
        %v1813 = vmul.f32 %v1781, %v1386
        %v1814 = vmul.f32 %v1782, %v1388
        %v1815 = vmul.f32 %v1783, %v1499
        %v1816 = vmul.f32 %v1784, %v1501
        %v1817 = vmul.f32 %v1785, %v1612
        %v1818 = vmul.f32 %v1786, %v1614
        %v1819 = vmul.f32 %v1787, %v1725
        %v1820 = vmul.f32 %v1788, %v1727
        %v1821 = vmul.f32 %v1789, %v1390
        %v1822 = vmul.f32 %v1790, %v1392
        %v1823 = vmul.f32 %v1791, %v1503
        %v1824 = vmul.f32 %v1792, %v1505
        %v1825 = vmul.f32 %v1793, %v1616
        %v1826 = vmul.f32 %v1794, %v1618
        %v1827 = vmul.f32 %v1795, %v1729
        %v1828 = vmul.f32 %v1796, %v1731
        %v1829 = vld [vmem:[%s3] sm:$0xf]
        %vm1830 = vcmask 261120
        %v1832 = vsel %vm1830, %v1829, 0
        %1834 = vmatprep.subr.mxu0 %v1798
        %1835 = vmatpush1.msra.mxu0 %v1797
        %1836 = vmatprep.subr.mxu0 %v1806
        %1837 = vmatpush1.msra.mxu0 %v1805
        %1838 = vmatprep.subr.mxu0 %v1814
        %1839 = vmatpush1.msra.mxu0 %v1813
        %1840 = vmatprep.subr.mxu0 %v1822
        %1841 = vmatpush1.msra.mxu0 %v1821
        %1842 = vmatprep.subr.mxu0 0.0
        %1843 = vmatpush1.msra.mxu0 0.0
        %1844 = vmatprep.subr.mxu0 0.0
        %1845 = vmatpush1.msra.mxu0 0.0
        %1846 = vmatprep.subr.mxu0 0.0
        %1847 = vmatpush1.msra.mxu0 0.0
        %1848 = vmatprep.subr.mxu0 0.0
        %1849 = vmatpush1.msra.mxu0 0.0
        %1850 = vmatprep.subr.mxu0 0.0
        %1851 = vmatpush1.msra.mxu0 0.0
        %1852 = vmatprep.subr.mxu0 0.0
        %1853 = vmatpush1.msra.mxu0 0.0
        %1854 = vmatprep.subr.mxu0 0.0
        %1855 = vmatpush1.msra.mxu0 0.0
        %1856 = vmatprep.subr.mxu0 0.0
        %1857 = vmatpush1.msra.mxu0 0.0
        %1858 = vmatprep.subr.mxu0 0.0
        %1859 = vmatpush1.msra.mxu0 0.0
        %1860 = vmatprep.subr.mxu0 0.0
        %1861 = vmatpush1.msra.mxu0 0.0
        %1862 = vmatprep.subr.mxu0 0.0
        %1863 = vmatpush1.msra.mxu0 0.0
        %1864 = vmatprep.subr.mxu0 0.0
        %1865 = vmatpush1.msra.mxu0 0.0
        %1866 = vmatprep.subr.mxu0 0.0
        %1867 = vmatpush1.msra.mxu0 0.0
        %1868 = vmatprep.subr.mxu0 0.0
        %1869 = vmatpush1.msra.mxu0 0.0
        %1870 = vmatprep.subr.mxu0 0.0
        %1871 = vmatpush1.msra.mxu0 0.0
        %1872 = vmatprep.subr.mxu0 0.0
        %1873 = vmatpush1.msra.mxu0 0.0
        %1874 = vmatprep.subr.mxu0 0.0
        %1875 = vmatpush1.msra.mxu0 0.0
        %1876 = vmatprep.subr.mxu0 0.0
        %1877 = vmatpush1.msra.mxu0 0.0
        %1878 = vmatprep.subr.mxu0 0.0
        %1879 = vmatpush1.msra.mxu0 0.0
        %1880 = vmatprep.subr.mxu0 0.0
        %1881 = vmatpush1.msra.mxu0 0.0
        %1882 = vmatprep.subr.mxu0 0.0
        %1883 = vmatpush1.msra.mxu0 0.0
        %1884 = vmatprep.subr.mxu0 0.0
        %1885 = vmatpush1.msra.mxu0 0.0
        %1886 = vmatprep.subr.mxu0 0.0
        %1887 = vmatpush1.msra.mxu0 0.0
        %1888 = vmatprep.subr.mxu0 0.0
        %1889 = vmatpush1.msra.mxu0 0.0
        %1890 = vmatprep.subr.mxu0 0.0
        %1891 = vmatpush1.msra.mxu0 0.0
        %1892 = vmatprep.subr.mxu0 0.0
        %1893 = vmatpush1.msra.mxu0 0.0
        %1894 = vmatprep.subr.mxu0 0.0
        %1895 = vmatpush1.msra.mxu0 0.0
        %1896 = vmatprep.subr.mxu0 0.0
        %1897 = vmatpush1.msra.mxu0 0.0
        %1898 = vmatprep.mubr.f32.mxu0 0.0
        %1899 = vmatmul.mubr.f32.gmra.mrb[0].mxu0 %v1832
        %v1900 = vpop.f32.mrb[0].mxu0
        %v1901 = vadd.f32 0.0, %v1900
        %v1902 = vpop.f32.mrb[0].mxu0
        %v1903 = vadd.f32 0.0, %v1902
        %1904 = vdwg.mxu0
        %1905 = vmatprep.subr.mxu0 %v1800
        %1906 = vmatpush1.msra.mxu0 %v1799
        %1907 = vmatprep.subr.mxu0 %v1808
        %1908 = vmatpush1.msra.mxu0 %v1807
        %1909 = vmatprep.subr.mxu0 %v1816
        %1910 = vmatpush1.msra.mxu0 %v1815
        %1911 = vmatprep.subr.mxu0 %v1824
        %1912 = vmatpush1.msra.mxu0 %v1823
        %1913 = vmatprep.subr.mxu0 0.0
        %1914 = vmatpush1.msra.mxu0 0.0
        %1915 = vmatprep.subr.mxu0 0.0
        %1916 = vmatpush1.msra.mxu0 0.0
        %1917 = vmatprep.subr.mxu0 0.0
        %1918 = vmatpush1.msra.mxu0 0.0
        %1919 = vmatprep.subr.mxu0 0.0
        %1920 = vmatpush1.msra.mxu0 0.0
        %1921 = vmatprep.subr.mxu0 0.0
        %1922 = vmatpush1.msra.mxu0 0.0
        %1923 = vmatprep.subr.mxu0 0.0
        %1924 = vmatpush1.msra.mxu0 0.0
        %1925 = vmatprep.subr.mxu0 0.0
        %1926 = vmatpush1.msra.mxu0 0.0
        %1927 = vmatprep.subr.mxu0 0.0
        %1928 = vmatpush1.msra.mxu0 0.0
        %1929 = vmatprep.subr.mxu0 0.0
        %1930 = vmatpush1.msra.mxu0 0.0
        %1931 = vmatprep.subr.mxu0 0.0
        %1932 = vmatpush1.msra.mxu0 0.0
        %1933 = vmatprep.subr.mxu0 0.0
        %1934 = vmatpush1.msra.mxu0 0.0
        %1935 = vmatprep.subr.mxu0 0.0
        %1936 = vmatpush1.msra.mxu0 0.0
        %1937 = vmatprep.subr.mxu0 0.0
        %1938 = vmatpush1.msra.mxu0 0.0
        %1939 = vmatprep.subr.mxu0 0.0
        %1940 = vmatpush1.msra.mxu0 0.0
        %1941 = vmatprep.subr.mxu0 0.0
        %1942 = vmatpush1.msra.mxu0 0.0
        %1943 = vmatprep.subr.mxu0 0.0
        %1944 = vmatpush1.msra.mxu0 0.0
        %1945 = vmatprep.subr.mxu0 0.0
        %1946 = vmatpush1.msra.mxu0 0.0
        %1947 = vmatprep.subr.mxu0 0.0
        %1948 = vmatpush1.msra.mxu0 0.0
        %1949 = vmatprep.subr.mxu0 0.0
        %1950 = vmatpush1.msra.mxu0 0.0
        %1951 = vmatprep.subr.mxu0 0.0
        %1952 = vmatpush1.msra.mxu0 0.0
        %1953 = vmatprep.subr.mxu0 0.0
        %1954 = vmatpush1.msra.mxu0 0.0
        %1955 = vmatprep.subr.mxu0 0.0
        %1956 = vmatpush1.msra.mxu0 0.0
        %1957 = vmatprep.subr.mxu0 0.0
        %1958 = vmatpush1.msra.mxu0 0.0
        %1959 = vmatprep.subr.mxu0 0.0
        %1960 = vmatpush1.msra.mxu0 0.0
        %1961 = vmatprep.subr.mxu0 0.0
        %1962 = vmatpush1.msra.mxu0 0.0
        %1963 = vmatprep.subr.mxu0 0.0
        %1964 = vmatpush1.msra.mxu0 0.0
        %1965 = vmatprep.subr.mxu0 0.0
        %1966 = vmatpush1.msra.mxu0 0.0
        %1967 = vmatprep.subr.mxu0 0.0
        %1968 = vmatpush1.msra.mxu0 0.0
        %1969 = vmatprep.mubr.f32.mxu0 0.0
        %1970 = vmatmul.mubr.f32.gmra.mrb[0].mxu0 %v1832
        %v1971 = vpop.f32.mrb[0].mxu0
        %v1972 = vadd.f32 0.0, %v1971
        %v1973 = vpop.f32.mrb[0].mxu0
        %v1974 = vadd.f32 0.0, %v1973
        %1975 = vdwg.mxu0
        %1976 = vmatprep.subr.mxu0 %v1802
        %1977 = vmatpush1.msra.mxu0 %v1801
        %1978 = vmatprep.subr.mxu0 %v1810
        %1979 = vmatpush1.msra.mxu0 %v1809
        %1980 = vmatprep.subr.mxu0 %v1818
        %1981 = vmatpush1.msra.mxu0 %v1817
        %1982 = vmatprep.subr.mxu0 %v1826
        %1983 = vmatpush1.msra.mxu0 %v1825
        %1984 = vmatprep.subr.mxu0 0.0
        %1985 = vmatpush1.msra.mxu0 0.0
        %1986 = vmatprep.subr.mxu0 0.0
        %1987 = vmatpush1.msra.mxu0 0.0
        %1988 = vmatprep.subr.mxu0 0.0
        %1989 = vmatpush1.msra.mxu0 0.0
        %1990 = vmatprep.subr.mxu0 0.0
        %1991 = vmatpush1.msra.mxu0 0.0
        %1992 = vmatprep.subr.mxu0 0.0
        %1993 = vmatpush1.msra.mxu0 0.0
        %1994 = vmatprep.subr.mxu0 0.0
        %1995 = vmatpush1.msra.mxu0 0.0
        %1996 = vmatprep.subr.mxu0 0.0
        %1997 = vmatpush1.msra.mxu0 0.0
        %1998 = vmatprep.subr.mxu0 0.0
        %1999 = vmatpush1.msra.mxu0 0.0
        %2000 = vmatprep.subr.mxu0 0.0
        %2001 = vmatpush1.msra.mxu0 0.0
        %2002 = vmatprep.subr.mxu0 0.0
        %2003 = vmatpush1.msra.mxu0 0.0
        %2004 = vmatprep.subr.mxu0 0.0
        %2005 = vmatpush1.msra.mxu0 0.0
        %2006 = vmatprep.subr.mxu0 0.0
        %2007 = vmatpush1.msra.mxu0 0.0
        %2008 = vmatprep.subr.mxu0 0.0
        %2009 = vmatpush1.msra.mxu0 0.0
        %2010 = vmatprep.subr.mxu0 0.0
        %2011 = vmatpush1.msra.mxu0 0.0
        %2012 = vmatprep.subr.mxu0 0.0
        %2013 = vmatpush1.msra.mxu0 0.0
        %2014 = vmatprep.subr.mxu0 0.0
        %2015 = vmatpush1.msra.mxu0 0.0
        %2016 = vmatprep.subr.mxu0 0.0
        %2017 = vmatpush1.msra.mxu0 0.0
        %2018 = vmatprep.subr.mxu0 0.0
        %2019 = vmatpush1.msra.mxu0 0.0
        %2020 = vmatprep.subr.mxu0 0.0
        %2021 = vmatpush1.msra.mxu0 0.0
        %2022 = vmatprep.subr.mxu0 0.0
        %2023 = vmatpush1.msra.mxu0 0.0
        %2024 = vmatprep.subr.mxu0 0.0
        %2025 = vmatpush1.msra.mxu0 0.0
        %2026 = vmatprep.subr.mxu0 0.0
        %2027 = vmatpush1.msra.mxu0 0.0
        %2028 = vmatprep.subr.mxu0 0.0
        %2029 = vmatpush1.msra.mxu0 0.0
        %2030 = vmatprep.subr.mxu0 0.0
        %2031 = vmatpush1.msra.mxu0 0.0
        %2032 = vmatprep.subr.mxu0 0.0
        %2033 = vmatpush1.msra.mxu0 0.0
        %2034 = vmatprep.subr.mxu0 0.0
        %2035 = vmatpush1.msra.mxu0 0.0
        %2036 = vmatprep.subr.mxu0 0.0
        %2037 = vmatpush1.msra.mxu0 0.0
        %2038 = vmatprep.subr.mxu0 0.0
        %2039 = vmatpush1.msra.mxu0 0.0
        %2040 = vmatprep.mubr.f32.mxu0 0.0
        %2041 = vmatmul.mubr.f32.gmra.mrb[0].mxu0 %v1832
        %v2042 = vpop.f32.mrb[0].mxu0
        %v2043 = vadd.f32 0.0, %v2042
        %v2044 = vpop.f32.mrb[0].mxu0
        %v2045 = vadd.f32 0.0, %v2044
        %2046 = vdwg.mxu0
        %2047 = vmatprep.subr.mxu0 %v1804
        %2048 = vmatpush1.msra.mxu0 %v1803
        %2049 = vmatprep.subr.mxu0 %v1812
        %2050 = vmatpush1.msra.mxu0 %v1811
        %2051 = vmatprep.subr.mxu0 %v1820
        %2052 = vmatpush1.msra.mxu0 %v1819
        %2053 = vmatprep.subr.mxu0 %v1828
        %2054 = vmatpush1.msra.mxu0 %v1827
        %2055 = vmatprep.subr.mxu0 0.0
        %2056 = vmatpush1.msra.mxu0 0.0
        %2057 = vmatprep.subr.mxu0 0.0
        %2058 = vmatpush1.msra.mxu0 0.0
        %2059 = vmatprep.subr.mxu0 0.0
        %2060 = vmatpush1.msra.mxu0 0.0
        %2061 = vmatprep.subr.mxu0 0.0
        %2062 = vmatpush1.msra.mxu0 0.0
        %2063 = vmatprep.subr.mxu0 0.0
        %2064 = vmatpush1.msra.mxu0 0.0
        %2065 = vmatprep.subr.mxu0 0.0
        %2066 = vmatpush1.msra.mxu0 0.0
        %2067 = vmatprep.subr.mxu0 0.0
        %2068 = vmatpush1.msra.mxu0 0.0
        %2069 = vmatprep.subr.mxu0 0.0
        %2070 = vmatpush1.msra.mxu0 0.0
        %2071 = vmatprep.subr.mxu0 0.0
        %2072 = vmatpush1.msra.mxu0 0.0
        %2073 = vmatprep.subr.mxu0 0.0
        %2074 = vmatpush1.msra.mxu0 0.0
        %2075 = vmatprep.subr.mxu0 0.0
        %2076 = vmatpush1.msra.mxu0 0.0
        %2077 = vmatprep.subr.mxu0 0.0
        %2078 = vmatpush1.msra.mxu0 0.0
        %2079 = vmatprep.subr.mxu0 0.0
        %2080 = vmatpush1.msra.mxu0 0.0
        %2081 = vmatprep.subr.mxu0 0.0
        %2082 = vmatpush1.msra.mxu0 0.0
        %2083 = vmatprep.subr.mxu0 0.0
        %2084 = vmatpush1.msra.mxu0 0.0
        %2085 = vmatprep.subr.mxu0 0.0
        %2086 = vmatpush1.msra.mxu0 0.0
        %2087 = vmatprep.subr.mxu0 0.0
        %2088 = vmatpush1.msra.mxu0 0.0
        %2089 = vmatprep.subr.mxu0 0.0
        %2090 = vmatpush1.msra.mxu0 0.0
        %2091 = vmatprep.subr.mxu0 0.0
        %2092 = vmatpush1.msra.mxu0 0.0
        %2093 = vmatprep.subr.mxu0 0.0
        %2094 = vmatpush1.msra.mxu0 0.0
        %2095 = vmatprep.subr.mxu0 0.0
        %2096 = vmatpush1.msra.mxu0 0.0
        %2097 = vmatprep.subr.mxu0 0.0
        %2098 = vmatpush1.msra.mxu0 0.0
        %2099 = vmatprep.subr.mxu0 0.0
        %2100 = vmatpush1.msra.mxu0 0.0
        %2101 = vmatprep.subr.mxu0 0.0
        %2102 = vmatpush1.msra.mxu0 0.0
        %2103 = vmatprep.subr.mxu0 0.0
        %2104 = vmatpush1.msra.mxu0 0.0
        %2105 = vmatprep.subr.mxu0 0.0
        %2106 = vmatpush1.msra.mxu0 0.0
        %2107 = vmatprep.subr.mxu0 0.0
        %2108 = vmatpush1.msra.mxu0 0.0
        %2109 = vmatprep.subr.mxu0 0.0
        %2110 = vmatpush1.msra.mxu0 0.0
        %2111 = vmatprep.mubr.f32.mxu0 0.0
        %2112 = vmatmul.mubr.f32.gmra.mrb[0].mxu0 %v1832
        %v2113 = vpop.f32.mrb[0].mxu0
        %v2114 = vadd.f32 0.0, %v2113
        %v2115 = vpop.f32.mrb[0].mxu0
        %v2116 = vadd.f32 0.0, %v2115
        %2117 = vdwg.mxu0
        %v2118 = vlaneseq
        %v2119 = vshrl.u32 %v2118, 7
        %vm2120 = vcmp.eq.s32.totalorder %v2119, 0
        %v2121 = vsub.f32 0.0, %v1901
        %v2122 = vsub.f32 0.0, %v1903
        %v2123 = vsub.f32 0.0, %v1972
        %v2124 = vsub.f32 0.0, %v1974
        %v2125 = vsub.f32 0.0, %v2043
        %v2126 = vsub.f32 0.0, %v2045
        %v2127 = vsub.f32 0.0, %v2114
        %v2128 = vsub.f32 0.0, %v2116
        %v2129 = vsel %vm2120, %v1901, %v2121
        %v2130 = vsel %vm2120, %v1903, %v2122
        %v2131 = vsel %vm2120, %v1972, %v2123
        %v2132 = vsel %vm2120, %v1974, %v2124
        %v2133 = vsel %vm2120, %v2043, %v2125
        %v2134 = vsel %vm2120, %v2045, %v2126
        %v2135 = vsel %vm2120, %v2114, %v2127
        %v2136 = vsel %vm2120, %v2116, %v2128
        %v2137 = vmul.f32 %v2129, 1.442695
        %v2138 = vpow.pop %v2137
        %v2139 = vmul.f32 %v2130, 1.442695
        %v2140 = vpow.pop %v2139
        %v2141 = vmul.f32 %v2131, 1.442695
        %v2142 = vpow.pop %v2141
        %v2143 = vmul.f32 %v2132, 1.442695
        %v2144 = vpow.pop %v2143
        %v2145 = vmul.f32 %v2133, 1.442695
        %v2146 = vpow.pop %v2145
        %v2147 = vmul.f32 %v2134, 1.442695
        %v2148 = vpow.pop %v2147
        %v2149 = vmul.f32 %v2135, 1.442695
        %v2150 = vpow.pop %v2149
        %v2151 = vmul.f32 %v2136, 1.442695
        %v2152 = vpow.pop %v2151
        %v2153 = vsel %vm229, 1, 0
        %v2154 = vlaneseq
        %v2155 = vshrl.u32 %v2154, 7
        %v2156 = vsub.s32 0, %v2155
        %v2157 = vrot.slane %v2153, %v2156
        %v2158 = vlaneseq
        %v2159 = vshrl.u32 %v2158, 7
        %v2160 = vsub.s32 1, %v2159
        %v2161 = vrot.slane %v2153, %v2160
        %v2162 = vlaneseq
        %v2163 = vshrl.u32 %v2162, 7
        %v2164 = vsub.s32 2, %v2163
        %v2165 = vrot.slane %v2153, %v2164
        %v2166 = vlaneseq
        %v2167 = vshrl.u32 %v2166, 7
        %v2168 = vsub.s32 3, %v2167
        %v2169 = vrot.slane %v2153, %v2168
        %v2170 = vlaneseq
        %v2171 = vshrl.u32 %v2170, 7
        %v2172 = vsub.s32 4, %v2171
        %v2173 = vrot.slane %v2153, %v2172
        %v2174 = vlaneseq
        %v2175 = vshrl.u32 %v2174, 7
        %v2176 = vsub.s32 5, %v2175
        %v2177 = vrot.slane %v2153, %v2176
        %v2178 = vlaneseq
        %v2179 = vshrl.u32 %v2178, 7
        %v2180 = vsub.s32 6, %v2179
        %v2181 = vrot.slane %v2153, %v2180
        %v2182 = vlaneseq
        %v2183 = vshrl.u32 %v2182, 7
        %v2184 = vsub.s32 7, %v2183
        %v2185 = vrot.slane %v2153, %v2184
        %vm2186 = vcmp.eq.s32.totalorder %v2157, 1
        %vm2187 = vcmp.eq.s32.totalorder %v2161, 1
        %vm2188 = vcmp.eq.s32.totalorder %v2165, 1
        %vm2189 = vcmp.eq.s32.totalorder %v2169, 1
        %vm2190 = vcmp.eq.s32.totalorder %v2173, 1
        %vm2191 = vcmp.eq.s32.totalorder %v2177, 1
        %vm2192 = vcmp.eq.s32.totalorder %v2181, 1
        %vm2193 = vcmp.eq.s32.totalorder %v2185, 1
        %v2194 = vsel %vm2186, %v2138, 0.0
        %v2195 = vsel %vm2187, %v2140, 0.0
        %v2196 = vsel %vm2188, %v2142, 0.0
        %v2197 = vsel %vm2189, %v2144, 0.0
        %v2198 = vsel %vm2190, %v2146, 0.0
        %v2199 = vsel %vm2191, %v2148, 0.0
        %v2200 = vsel %vm2192, %v2150, 0.0
        %v2201 = vsel %vm2193, %v2152, 0.0
        %v2202 = vadd.f32 %v2138, 1.0
        %v2203 = vadd.f32 %v2140, 1.0
        %v2204 = vadd.f32 %v2142, 1.0
        %v2205 = vadd.f32 %v2144, 1.0
        %v2206 = vadd.f32 %v2146, 1.0
        %v2207 = vadd.f32 %v2148, 1.0
        %v2208 = vadd.f32 %v2150, 1.0
        %v2209 = vadd.f32 %v2152, 1.0
        %v2210 = vrcp.pop %v2202
        %v2211 = vmul.f32 1.0, %v2210
        %v2212 = vrcp.pop %v2203
        %v2213 = vmul.f32 1.0, %v2212
        %v2214 = vrcp.pop %v2204
        %v2215 = vmul.f32 1.0, %v2214
        %v2216 = vrcp.pop %v2205
        %v2217 = vmul.f32 1.0, %v2216
        %v2218 = vrcp.pop %v2206
        %v2219 = vmul.f32 1.0, %v2218
        %v2220 = vrcp.pop %v2207
        %v2221 = vmul.f32 1.0, %v2220
        %v2222 = vrcp.pop %v2208
        %v2223 = vmul.f32 1.0, %v2222
        %v2224 = vrcp.pop %v2209
        %v2225 = vmul.f32 1.0, %v2224
        %v2226 = vsel %vm2120, %v2194, %v2211
        %v2227 = vsel %vm2120, %v2195, %v2213
        %v2228 = vsel %vm2120, %v2196, %v2215
        %v2229 = vsel %vm2120, %v2197, %v2217
        %v2230 = vsel %vm2120, %v2198, %v2219
        %v2231 = vsel %vm2120, %v2199, %v2221
        %v2232 = vsel %vm2120, %v2200, %v2223
        %v2233 = vsel %vm2120, %v2201, %v2225
        %v2242 = vcombine.low %v2226, %v2227
        %v2243 = vcombine.low %v2228, %v2229
        %v2244 = vcombine.low %v2230, %v2231
        %v2245 = vcombine.low %v2232, %v2233
        %2250 = vst [vmem:[%s206] sm:$0xff] %v2242
        %2251 = vst [vmem:[%s206 + $0x8] sm:$0xff] %v2243
        %2252 = vst [vmem:[%s206 + $0x10] sm:$0xff] %v2244
        %2253 = vst [vmem:[%s206 + $0x18] sm:$0xff] %v2245
        %s2254 = sand.u32 %s116, 1
        %s2255 = scalar_lea.sflag [#allocation5], %s2254
        %s2256 = sand.u32 %s116, 1
        %s2257 = smul.addr %s2256, 32
        %s2258 = scalar_lea.vmem [#allocation6], %s2257
        // Predicated region
        $region41: #{tpu_custom_call.1} parent=35 // pred_check
          %p2259 = pneg %p126
        $region42: #{tpu_custom_call.1} parent=35 // pred_check_branch
          %2261 = sbr.rel (%p2259) target = $region44
        $region43: #{tpu_custom_call.1} parent=35 // pred_region
          %s2262 = smul.u32 8, %s19
          %s2264 = ssub.s32 512, 512
          %2265 = vsyncadd %s2255, %s2264
          %s2266 = smul.addr %s2262, 64
          %s2267 = scalar_lea.hbm %s4, %s2266
          %s2269 = sshll.u32 %s2258, 4
          %s2270 = int_to_ptr.vmem [resolvable:$true] %s2269
          %2272 = dma.vmem_to_hbm [thread:$0]  %s2270, 512, %s2267, %s2255
        $region44: #{tpu_custom_call.1} parent=35 // pred_fallthru
          _
      $region36: #{tpu_custom_call.1} parent=5 // pred_fallthru
        _
      %p2273 = scmp.le.s32.totalorder 2, %s14
      // Predicated region
      $region45: #{tpu_custom_call.1} parent=5 // pred_check
        %p2274 = pneg %p2273
      $region46: #{tpu_custom_call.1} parent=5 // pred_check_branch
        %2276 = sbr.rel (%p2274) target = $region48
      $region47: #{tpu_custom_call.1} parent=5 // pred_region
        %s2277 = ssub.s32 %s14, 2
        // Predicated region
        $region49: #{tpu_custom_call.1} parent=47 // pred_check
          %p2278 = pneg %p132
        $region50: #{tpu_custom_call.1} parent=47 // pred_check_branch
          %2280 = sbr.rel (%p2278) target = $region52
        $region51: #{tpu_custom_call.1} parent=47 // pred_region
          %s2281 = sand.u32 %s117, 1
          %s2282 = scalar_lea.sflag [#allocation5], %s2281
          %s2283 = sand.u32 %s117, 1
          %s2284 = smul.addr %s2283, 32
          %s2285 = scalar_lea.vmem [#allocation6], %s2284
          %2286 = dma.done %s2282, 512
        $region52: #{tpu_custom_call.1} parent=47 // pred_fallthru
          _
      $region48: #{tpu_custom_call.1} parent=5 // pred_fallthru
        _
    $region6: #{tpu_custom_call.1} parent=1 // loop_footer
      %s18 = sadd.s32 1, %s14
    $region7: #{tpu_custom_call.1} parent=1 // loop_footer_branch
      %13 = sbr.rel target = $region3
    $region8: #{tpu_custom_call.1} parent=1 // loop_exit
      _
    %2287 = vsyncpa [#allocation4], 1
    %s2288 = scalar_lea.sflag [#allocation4], 1
    %2289 = vsyncpa %s2288, 1
    %2290 = vsyncpa [#allocation5], 1
    %s2291 = scalar_lea.sflag [#allocation5], 1
    %2292 = vsyncpa %s2291, 1

</llo_original>
